<compile_context>
chip_gen: v5e
topology: v5e:2x2
jax: 0.10.0
libtpu: 0.0.40
codegen_flags: <defaults>
</compile_context>

<pallas_src>
import jax
import jax.numpy as jnp
from jax.experimental import pallas as pl
from jax.experimental.pallas import tpu as pltpu

D_MODEL = 64          # d_model
N_LR = 2              # n_lr
EPS = 1e-5            # torch.nn.LayerNorm default eps


def _layernorm(x, gamma, beta):
    mu = jnp.mean(x, axis=-1, keepdims=True)
    xc = x - mu
    var = jnp.mean(xc * xc, axis=-1, keepdims=True)
    inv = jax.lax.rsqrt(var + EPS)
    return xc * inv * gamma + beta


def lrc_decoder_kernel(lig_ref, rec_ref,
                       lng_ref, lnb_ref,                           # norm_l (over D)
                       w1l_ref, w1r_ref, b1_ref, g1_ref, be1_ref,  # hidden layer 1
                       w2_ref, b2_ref, g2_ref, be2_ref,            # hidden layer 2
                       wo_ref, bo_ref,                             # out_layer (n_lr, 2D) / (1, n_lr)
                       o_ref):
    tl = lig_ref.shape[1]
    tr = rec_ref.shape[1]
    d2 = 2 * D_MODEL

    lig = lig_ref[0]                                   # (tl, D) f32
    rec = rec_ref[0]                                   # (tr, D) f32

    # norm_l: applied once per ligand row (not once per pair).
    lig_n = _layernorm(lig, lng_ref[...], lnb_ref[...])

    # Hidden layer 1 via linearity of the Linear over the concat:
    #   concat(lig_n, rec) @ W1 + b1 = lig_n @ W1[:D] + (rec @ W1[D:] + b1)
    a_l = jnp.dot(lig_n.astype(jnp.bfloat16), w1l_ref[...],
                  preferred_element_type=jnp.float32)                    # (tl, 2D) f32
    a_r = jnp.dot(rec.astype(jnp.bfloat16), w1r_ref[...],
                  preferred_element_type=jnp.float32) + b1_ref[...]      # (tr, 2D) f32
    h = a_l[:, None, :] + a_r[None, :, :]                                # (tl, tr, 2D)
    h = jnp.maximum(h, 0.0)
    h = _layernorm(h, g1_ref[...], be1_ref[...])

    # Hidden layer 2.
    h2 = jnp.dot(h.reshape(tl * tr, d2).astype(jnp.bfloat16), w2_ref[...],
                 preferred_element_type=jnp.float32) + b2_ref[...]       # (tl*tr, 2D)
    h2 = jnp.maximum(h2, 0.0)
    h2 = _layernorm(h2, g2_ref[...], be2_ref[...])
    h2 = h2.reshape(tl, tr, d2)

    # Output layer: n_lr=2 tiny projections done as VPU multiply + lane-reduce (no padded MXU
    # matmul, no 128-lane padded output writes).  Result layout (tl, n_lr, tr) -> receptor index
    # ends up on the lane axis of the output block.
    wo = wo_ref[...]                                                     # (n_lr, 2D) f32
    bo = bo_ref[...]                                                     # (1, n_lr)  f32
    for c in range(N_LR):
        oc = jnp.sum(h2 * wo[c].reshape(1, 1, d2), axis=-1) + bo[:, c:c + 1]   # (tl, tr)
        o_ref[0, :, c, :] = oc.astype(o_ref.dtype)


def init_params(key, d_model=D_MODEL, n_lr=N_LR):
    d2 = 2 * d_model
    ks = jax.random.split(key, 8)
    p = {}
    # norm_l
    p["ln_g"] = (1.0 + 0.1 * jax.random.normal(ks[0], (1, d_model))).astype(jnp.float32)
    p["ln_b"] = (0.1 * jax.random.normal(ks[1], (1, d_model))).astype(jnp.float32)
    # hidden layers (nlayers-1 = 2)
    for i, (kw, kb) in enumerate([(ks[2], ks[3]), (ks[4], ks[5])], start=1):
        p[f"w{i}"] = (0.05 * jax.random.normal(kw, (d2, d2))).astype(jnp.float32)
        p[f"b{i}"] = (0.05 * jax.random.normal(kb, (1, d2))).astype(jnp.float32)
        p[f"g{i}"] = (1.0 + 0.1 * jax.random.normal(jax.random.fold_in(kw, 7), (1, d2))).astype(jnp.float32)
        p[f"be{i}"] = (0.1 * jax.random.normal(jax.random.fold_in(kb, 7), (1, d2))).astype(jnp.float32)
    # out_layer
    p["wo"] = (0.05 * jax.random.normal(ks[6], (d2, n_lr))).astype(jnp.float32)
    p["bo"] = (0.05 * jax.random.normal(ks[7], (1, n_lr))).astype(jnp.float32)
    return p


def _round_up(x, m):
    return (x + m - 1) // m * m


def _pick_l_tile(L, target):
    """Ligand tile: multiple of 8 (sublane dim), divides padded L."""
    target = max(8, (target // 8) * 8)
    tile = target if L >= target else _round_up(L, 8)
    return _round_up(L, tile), tile


def _pick_r_tile(R):
    """Receptor tile: lane dim of the output block -> must be a multiple of 128 or the full extent."""
    if R > 128:
        return _round_up(R, 128), 128
    Rp = _round_up(R, 8)
    return Rp, Rp


def lrc_decoder_pallas(ligand, receptor, params, *, tl_target=32):
    B, L, D = ligand.shape
    _, R, _ = receptor.shape
    assert D == D_MODEL
    d2 = 2 * D

    Lp, tl = _pick_l_tile(L, tl_target)
    Rp, tr = _pick_r_tile(R)
    if Lp != L:
        ligand = jnp.pad(ligand, ((0, 0), (0, Lp - L), (0, 0)))
    if Rp != R:
        receptor = jnp.pad(receptor, ((0, 0), (0, Rp - R), (0, 0)))

    # Weight prep: split W1 into ligand/receptor halves of the concat, cast matmul weights to bf16.
    w1 = params["w1"]
    w1l = w1[:D, :].astype(jnp.bfloat16)
    w1r = w1[D:, :].astype(jnp.bfloat16)
    w2 = params["w2"].astype(jnp.bfloat16)
    wo_t = params["wo"].T.astype(jnp.float32)        # (n_lr, 2D) for VPU matvec
    bo = params["bo"].astype(jnp.float32)            # (1, n_lr)

    plist = [params["ln_g"], params["ln_b"],
             w1l, w1r, params["b1"], params["g1"], params["be1"],
             w2, params["b2"], params["g2"], params["be2"],
             wo_t, bo]

    def const_spec(a):
        idx = (0,) * a.ndim
        return pl.BlockSpec(a.shape, lambda b, i, j: idx)

    grid = (B, Lp // tl, Rp // tr)
    out = pl.pallas_call(
        lrc_decoder_kernel,
        out_shape=jax.ShapeDtypeStruct((B, Lp, N_LR, Rp), jnp.float32),
        grid=grid,
        in_specs=[pl.BlockSpec((1, tl, D), lambda b, i, j: (b, i, 0)),
                  pl.BlockSpec((1, tr, D), lambda b, i, j: (b, j, 0))]
                 + [const_spec(a) for a in plist],
        out_specs=pl.BlockSpec((1, tl, N_LR, tr), lambda b, i, j: (b, i, 0, j)),
        compiler_params=pltpu.CompilerParams(
            dimension_semantics=("parallel", "parallel", "parallel")),
    )(ligand, receptor, *plist)

    # Drop padded ligand/receptor rows, move n_lr last, flatten pairs l-major/r-minor.
    out = out[:, :L, :, :R]                              # (B, L, n_lr, R)
    return jnp.transpose(out, (0, 1, 3, 2)).reshape(B, L * R, N_LR)


def lrc_decoder_ref(ligand, receptor, params):
    # pure-JAX f32 reference mirroring the PyTorch forward
    lig_n = _layernorm(ligand, params["ln_g"][0], params["ln_b"][0])
    B, L, D = ligand.shape
    R = receptor.shape[1]
    lig_b = jnp.broadcast_to(lig_n[:, :, None, :], (B, L, R, D))
    rec_b = jnp.broadcast_to(receptor[:, None, :, :], (B, L, R, D))
    h = jnp.concatenate([lig_b, rec_b], axis=-1).reshape(B, L * R, 2 * D)
    for i in (1, 2):
        h = h @ params[f"w{i}"] + params[f"b{i}"][0]
        h = jnp.maximum(h, 0.0)
        h = _layernorm(h, params[f"g{i}"][0], params[f"be{i}"][0])
    return h @ params["wo"] + params["bo"][0]


if __name__ == "__main__":
    key = jax.random.PRNGKey(0)
    k_lig, k_rec, k_par = jax.random.split(key, 3)
    params = init_params(k_par)

    # Case 1: small shapes (single tile per batch after padding to 8x8).
    B, L, R = 2, 4, 4
    ligand = jax.random.normal(k_lig, (B, L, D_MODEL), dtype=jnp.float32)
    receptor = jax.random.normal(k_rec, (B, R, D_MODEL), dtype=jnp.float32)
    out = jax.block_until_ready(lrc_decoder_pallas(ligand, receptor, params))
    ref = jax.block_until_ready(lrc_decoder_ref(ligand, receptor, params))
    assert out.shape == (B, L * R, N_LR)
    assert jnp.allclose(out, ref, rtol=5e-2, atol=5e-2), "mismatch vs. reference (case 1)"

    # Case 2: non-tile-aligned L, R > 128 -> multi-tile grid over both L and R (exercises padding,
    # the lane-dim tiling of the receptor axis, and the transposed output layout).
    B2, L2, R2 = 2, 12, 160
    lig2 = jax.random.normal(jax.random.fold_in(k_lig, 1), (B2, L2, D_MODEL), dtype=jnp.float32)
    rec2 = jax.random.normal(jax.random.fold_in(k_rec, 1), (B2, R2, D_MODEL), dtype=jnp.float32)
    out2 = jax.block_until_ready(lrc_decoder_pallas(lig2, rec2, params, tl_target=8))
    ref2 = jax.block_until_ready(lrc_decoder_ref(lig2, rec2, params))
    assert out2.shape == (B2, L2 * R2, N_LR)
    assert jnp.allclose(out2, ref2, rtol=5e-2, atol=5e-2), "mismatch vs. reference (case 2)"

    print("KERNEL_OK")
</pallas_src>

<mosaic_0001>
module attributes {stable_mosaic.version = 11 : i64} {
  func.func @lrc_decoder_kernel(%arg0: i32, %arg1: i32, %arg2: i32, %arg3: memref<1x8x64xf32, #tpu.memory_space<vmem>>, %arg4: memref<1x8x64xf32, #tpu.memory_space<vmem>>, %arg5: memref<1x64xf32, #tpu.memory_space<vmem>>, %arg6: memref<1x64xf32, #tpu.memory_space<vmem>>, %arg7: memref<64x128xbf16, #tpu.memory_space<vmem>>, %arg8: memref<64x128xbf16, #tpu.memory_space<vmem>>, %arg9: memref<1x128xf32, #tpu.memory_space<vmem>>, %arg10: memref<1x128xf32, #tpu.memory_space<vmem>>, %arg11: memref<1x128xf32, #tpu.memory_space<vmem>>, %arg12: memref<128x128xbf16, #tpu.memory_space<vmem>>, %arg13: memref<1x128xf32, #tpu.memory_space<vmem>>, %arg14: memref<1x128xf32, #tpu.memory_space<vmem>>, %arg15: memref<1x128xf32, #tpu.memory_space<vmem>>, %arg16: memref<2x128xf32, #tpu.memory_space<vmem>>, %arg17: memref<1x2xf32, #tpu.memory_space<vmem>>, %arg18: memref<1x8x2x8xf32, #tpu.memory_space<vmem>>) attributes {dimension_semantics = [#tpu.dimension_semantics<parallel>, #tpu.dimension_semantics<parallel>, #tpu.dimension_semantics<parallel>], iteration_bounds = array<i64: 2, 1, 1>, scalar_prefetch = 0 : i64, scratch_operands = 0 : i64, tpu.core_type = #tpu.core_type<tc>, window_params = [{transform_indices = @transform_0, window_bounds = array<i64: 1, 8, 64>}, {transform_indices = @transform_1, window_bounds = array<i64: 1, 8, 64>}, {pipeline_mode = #tpu.pipeline_mode<synchronous>, transform_indices = @transform_2, window_bounds = array<i64: 1, 64>}, {pipeline_mode = #tpu.pipeline_mode<synchronous>, transform_indices = @transform_3, window_bounds = array<i64: 1, 64>}, {pipeline_mode = #tpu.pipeline_mode<synchronous>, transform_indices = @transform_4, window_bounds = array<i64: 64, 128>}, {pipeline_mode = #tpu.pipeline_mode<synchronous>, transform_indices = @transform_5, window_bounds = array<i64: 64, 128>}, {pipeline_mode = #tpu.pipeline_mode<synchronous>, transform_indices = @transform_6, window_bounds = array<i64: 1, 128>}, {pipeline_mode = #tpu.pipeline_mode<synchronous>, transform_indices = @transform_7, window_bounds = array<i64: 1, 128>}, {pipeline_mode = #tpu.pipeline_mode<synchronous>, transform_indices = @transform_8, window_bounds = array<i64: 1, 128>}, {pipeline_mode = #tpu.pipeline_mode<synchronous>, transform_indices = @transform_9, window_bounds = array<i64: 128, 128>}, {pipeline_mode = #tpu.pipeline_mode<synchronous>, transform_indices = @transform_10, window_bounds = array<i64: 1, 128>}, {pipeline_mode = #tpu.pipeline_mode<synchronous>, transform_indices = @transform_11, window_bounds = array<i64: 1, 128>}, {pipeline_mode = #tpu.pipeline_mode<synchronous>, transform_indices = @transform_12, window_bounds = array<i64: 1, 128>}, {pipeline_mode = #tpu.pipeline_mode<synchronous>, transform_indices = @transform_13, window_bounds = array<i64: 2, 128>}, {pipeline_mode = #tpu.pipeline_mode<synchronous>, transform_indices = @transform_14, window_bounds = array<i64: 1, 2>}, {transform_indices = @transform_15, window_bounds = array<i64: 1, 8, 2, 8>}]} {
    %c0 = arith.constant 0 : index
    %c0_0 = arith.constant 0 : index
    %c0_1 = arith.constant 0 : index
    %0 = vector.load %arg3[%c0, %c0_0, %c0_1] : memref<1x8x64xf32, #tpu.memory_space<vmem>>, vector<1x8x64xf32>
    %1 = vector.shape_cast %0 : vector<1x8x64xf32> to vector<8x64xf32>
    %c0_2 = arith.constant 0 : index
    %c0_3 = arith.constant 0 : index
    %c0_4 = arith.constant 0 : index
    %2 = vector.load %arg4[%c0_2, %c0_3, %c0_4] : memref<1x8x64xf32, #tpu.memory_space<vmem>>, vector<1x8x64xf32>
    %3 = vector.shape_cast %2 : vector<1x8x64xf32> to vector<8x64xf32>
    %c0_5 = arith.constant 0 : index
    %c0_6 = arith.constant 0 : index
    %4 = vector.load %arg5[%c0_5, %c0_6] : memref<1x64xf32, #tpu.memory_space<vmem>>, vector<1x64xf32>
    %c0_7 = arith.constant 0 : index
    %c0_8 = arith.constant 0 : index
    %5 = vector.load %arg6[%c0_7, %c0_8] : memref<1x64xf32, #tpu.memory_space<vmem>>, vector<1x64xf32>
    %cst = arith.constant dense<0.000000e+00> : vector<8xf32>
    %6 = vector.multi_reduction <add>, %1, %cst [1] : vector<8x64xf32> to vector<8xf32>
    %7 = vector.shape_cast %6 : vector<8xf32> to vector<8x1xf32>
    %cst_9 = arith.constant 6.400000e+01 : f32
    %8 = vector.broadcast %cst_9 : f32 to vector<8x1xf32>
    %9 = arith.divf %7, %8 : vector<8x1xf32>
    %10 = vector.broadcast %9 : vector<8x1xf32> to vector<8x64xf32>
    %11 = arith.subf %1, %10 : vector<8x64xf32>
    %12 = arith.mulf %11, %11 : vector<8x64xf32>
    %cst_10 = arith.constant dense<0.000000e+00> : vector<8xf32>
    %13 = vector.multi_reduction <add>, %12, %cst_10 [1] : vector<8x64xf32> to vector<8xf32>
    %14 = vector.shape_cast %13 : vector<8xf32> to vector<8x1xf32>
    %cst_11 = arith.constant 6.400000e+01 : f32
    %15 = vector.broadcast %cst_11 : f32 to vector<8x1xf32>
    %16 = arith.divf %14, %15 : vector<8x1xf32>
    %cst_12 = arith.constant 9.99999974E-6 : f32
    %17 = vector.broadcast %cst_12 : f32 to vector<8x1xf32>
    %18 = arith.addf %16, %17 : vector<8x1xf32>
    %19 = math.rsqrt %18 : vector<8x1xf32>
    %20 = vector.broadcast %19 : vector<8x1xf32> to vector<8x64xf32>
    %21 = arith.mulf %11, %20 : vector<8x64xf32>
    %22 = vector.broadcast %4 : vector<1x64xf32> to vector<8x64xf32>
    %23 = arith.mulf %21, %22 : vector<8x64xf32>
    %24 = vector.broadcast %5 : vector<1x64xf32> to vector<8x64xf32>
    %25 = arith.addf %23, %24 : vector<8x64xf32>
    %26 = arith.truncf %25 : vector<8x64xf32> to vector<8x64xbf16>
    %c0_13 = arith.constant 0 : index
    %c0_14 = arith.constant 0 : index
    %27 = vector.load %arg7[%c0_13, %c0_14] : memref<64x128xbf16, #tpu.memory_space<vmem>>, vector<64x128xbf16>
    %cst_15 = arith.constant dense<0.000000e+00> : vector<8x128xf32>
    %28 = tpu.matmul %26, %27, %cst_15 {dimension_numbers = #tpu.dot_dimension_numbers<[1], [0], [0], [1], [0, 0, 1, 1], [], []>} : vector<8x64xbf16>, vector<64x128xbf16>, vector<8x128xf32> -> vector<8x128xf32>
    %29 = arith.truncf %3 : vector<8x64xf32> to vector<8x64xbf16>
    %c0_16 = arith.constant 0 : index
    %c0_17 = arith.constant 0 : index
    %30 = vector.load %arg8[%c0_16, %c0_17] : memref<64x128xbf16, #tpu.memory_space<vmem>>, vector<64x128xbf16>
    %cst_18 = arith.constant dense<0.000000e+00> : vector<8x128xf32>
    %31 = tpu.matmul %29, %30, %cst_18 {dimension_numbers = #tpu.dot_dimension_numbers<[1], [0], [0], [1], [0, 0, 1, 1], [], []>} : vector<8x64xbf16>, vector<64x128xbf16>, vector<8x128xf32> -> vector<8x128xf32>
    %c0_19 = arith.constant 0 : index
    %c0_20 = arith.constant 0 : index
    %32 = vector.load %arg9[%c0_19, %c0_20] : memref<1x128xf32, #tpu.memory_space<vmem>>, vector<1x128xf32>
    %33 = vector.broadcast %32 : vector<1x128xf32> to vector<8x128xf32>
    %34 = arith.addf %31, %33 : vector<8x128xf32>
    %35 = vector.shape_cast %28 : vector<8x128xf32> to vector<8x1x128xf32>
    %36 = vector.shape_cast %34 : vector<8x128xf32> to vector<1x8x128xf32>
    %37 = vector.broadcast %35 : vector<8x1x128xf32> to vector<8x8x128xf32>
    %38 = vector.broadcast %36 : vector<1x8x128xf32> to vector<8x8x128xf32>
    %39 = arith.addf %37, %38 : vector<8x8x128xf32>
    %cst_21 = arith.constant 0.000000e+00 : f32
    %40 = vector.broadcast %cst_21 : f32 to vector<8x8x128xf32>
    %41 = arith.maximumf %39, %40 : vector<8x8x128xf32>
    %c0_22 = arith.constant 0 : index
    %c0_23 = arith.constant 0 : index
    %42 = vector.load %arg10[%c0_22, %c0_23] : memref<1x128xf32, #tpu.memory_space<vmem>>, vector<1x128xf32>
    %c0_24 = arith.constant 0 : index
    %c0_25 = arith.constant 0 : index
    %43 = vector.load %arg11[%c0_24, %c0_25] : memref<1x128xf32, #tpu.memory_space<vmem>>, vector<1x128xf32>
    %cst_26 = arith.constant dense<0.000000e+00> : vector<8x8xf32>
    %44 = vector.multi_reduction <add>, %41, %cst_26 [2] : vector<8x8x128xf32> to vector<8x8xf32>
    %45 = vector.shape_cast %44 : vector<8x8xf32> to vector<8x8x1xf32>
    %cst_27 = arith.constant 1.280000e+02 : f32
    %46 = vector.broadcast %cst_27 : f32 to vector<8x8x1xf32>
    %47 = arith.divf %45, %46 : vector<8x8x1xf32>
    %48 = vector.broadcast %47 : vector<8x8x1xf32> to vector<8x8x128xf32>
    %49 = arith.subf %41, %48 : vector<8x8x128xf32>
    %50 = arith.mulf %49, %49 : vector<8x8x128xf32>
    %cst_28 = arith.constant dense<0.000000e+00> : vector<8x8xf32>
    %51 = vector.multi_reduction <add>, %50, %cst_28 [2] : vector<8x8x128xf32> to vector<8x8xf32>
    %52 = vector.shape_cast %51 : vector<8x8xf32> to vector<8x8x1xf32>
    %cst_29 = arith.constant 1.280000e+02 : f32
    %53 = vector.broadcast %cst_29 : f32 to vector<8x8x1xf32>
    %54 = arith.divf %52, %53 : vector<8x8x1xf32>
    %cst_30 = arith.constant 9.99999974E-6 : f32
    %55 = vector.broadcast %cst_30 : f32 to vector<8x8x1xf32>
    %56 = arith.addf %54, %55 : vector<8x8x1xf32>
    %57 = math.rsqrt %56 : vector<8x8x1xf32>
    %58 = vector.broadcast %57 : vector<8x8x1xf32> to vector<8x8x128xf32>
    %59 = arith.mulf %49, %58 : vector<8x8x128xf32>
    %60 = vector.shape_cast %42 : vector<1x128xf32> to vector<1x1x128xf32>
    %61 = vector.broadcast %60 : vector<1x1x128xf32> to vector<8x8x128xf32>
    %62 = arith.mulf %59, %61 : vector<8x8x128xf32>
    %63 = vector.shape_cast %43 : vector<1x128xf32> to vector<1x1x128xf32>
    %64 = vector.broadcast %63 : vector<1x1x128xf32> to vector<8x8x128xf32>
    %65 = arith.addf %62, %64 : vector<8x8x128xf32>
    %66 = vector.shape_cast %65 : vector<8x8x128xf32> to vector<64x128xf32>
    %67 = arith.truncf %66 : vector<64x128xf32> to vector<64x128xbf16>
    %c0_31 = arith.constant 0 : index
    %c0_32 = arith.constant 0 : index
    %68 = vector.load %arg12[%c0_31, %c0_32] : memref<128x128xbf16, #tpu.memory_space<vmem>>, vector<128x128xbf16>
    %cst_33 = arith.constant dense<0.000000e+00> : vector<64x128xf32>
    %69 = tpu.matmul %67, %68, %cst_33 {dimension_numbers = #tpu.dot_dimension_numbers<[1], [0], [0], [1], [0, 0, 1, 1], [], []>} : vector<64x128xbf16>, vector<128x128xbf16>, vector<64x128xf32> -> vector<64x128xf32>
    %c0_34 = arith.constant 0 : index
    %c0_35 = arith.constant 0 : index
    %70 = vector.load %arg13[%c0_34, %c0_35] : memref<1x128xf32, #tpu.memory_space<vmem>>, vector<1x128xf32>
    %71 = vector.broadcast %70 : vector<1x128xf32> to vector<64x128xf32>
    %72 = arith.addf %69, %71 : vector<64x128xf32>
    %cst_36 = arith.constant 0.000000e+00 : f32
    %73 = vector.broadcast %cst_36 : f32 to vector<64x128xf32>
    %74 = arith.maximumf %72, %73 : vector<64x128xf32>
    %c0_37 = arith.constant 0 : index
    %c0_38 = arith.constant 0 : index
    %75 = vector.load %arg14[%c0_37, %c0_38] : memref<1x128xf32, #tpu.memory_space<vmem>>, vector<1x128xf32>
    %c0_39 = arith.constant 0 : index
    %c0_40 = arith.constant 0 : index
    %76 = vector.load %arg15[%c0_39, %c0_40] : memref<1x128xf32, #tpu.memory_space<vmem>>, vector<1x128xf32>
    %cst_41 = arith.constant dense<0.000000e+00> : vector<64xf32>
    %77 = vector.multi_reduction <add>, %74, %cst_41 [1] : vector<64x128xf32> to vector<64xf32>
    %78 = vector.shape_cast %77 : vector<64xf32> to vector<64x1xf32>
    %cst_42 = arith.constant 1.280000e+02 : f32
    %79 = vector.broadcast %cst_42 : f32 to vector<64x1xf32>
    %80 = arith.divf %78, %79 : vector<64x1xf32>
    %81 = vector.broadcast %80 : vector<64x1xf32> to vector<64x128xf32>
    %82 = arith.subf %74, %81 : vector<64x128xf32>
    %83 = arith.mulf %82, %82 : vector<64x128xf32>
    %cst_43 = arith.constant dense<0.000000e+00> : vector<64xf32>
    %84 = vector.multi_reduction <add>, %83, %cst_43 [1] : vector<64x128xf32> to vector<64xf32>
    %85 = vector.shape_cast %84 : vector<64xf32> to vector<64x1xf32>
    %cst_44 = arith.constant 1.280000e+02 : f32
    %86 = vector.broadcast %cst_44 : f32 to vector<64x1xf32>
    %87 = arith.divf %85, %86 : vector<64x1xf32>
    %cst_45 = arith.constant 9.99999974E-6 : f32
    %88 = vector.broadcast %cst_45 : f32 to vector<64x1xf32>
    %89 = arith.addf %87, %88 : vector<64x1xf32>
    %90 = math.rsqrt %89 : vector<64x1xf32>
    %91 = vector.broadcast %90 : vector<64x1xf32> to vector<64x128xf32>
    %92 = arith.mulf %82, %91 : vector<64x128xf32>
    %93 = vector.broadcast %75 : vector<1x128xf32> to vector<64x128xf32>
    %94 = arith.mulf %92, %93 : vector<64x128xf32>
    %95 = vector.broadcast %76 : vector<1x128xf32> to vector<64x128xf32>
    %96 = arith.addf %94, %95 : vector<64x128xf32>
    %97 = vector.shape_cast %96 : vector<64x128xf32> to vector<8x8x128xf32>
    %c0_46 = arith.constant 0 : index
    %c0_47 = arith.constant 0 : index
    %98 = vector.load %arg16[%c0_46, %c0_47] : memref<2x128xf32, #tpu.memory_space<vmem>>, vector<2x128xf32>
    %c0_48 = arith.constant 0 : index
    %c0_49 = arith.constant 0 : index
    %99 = vector.load %arg17[%c0_48, %c0_49] : memref<1x2xf32, #tpu.memory_space<vmem>>, vector<1x2xf32>
    %100 = vector.extract_strided_slice %98 {offsets = [0, 0], sizes = [1, 128], strides = [1, 1]} : vector<2x128xf32> to vector<1x128xf32>
    %101 = vector.shape_cast %100 : vector<1x128xf32> to vector<128xf32>
    %102 = vector.shape_cast %101 : vector<128xf32> to vector<1x1x128xf32>
    %103 = vector.broadcast %102 : vector<1x1x128xf32> to vector<8x8x128xf32>
    %104 = arith.mulf %97, %103 : vector<8x8x128xf32>
    %cst_50 = arith.constant dense<0.000000e+00> : vector<8x8xf32>
    %105 = vector.multi_reduction <add>, %104, %cst_50 [2] : vector<8x8x128xf32> to vector<8x8xf32>
    %106 = vector.extract_strided_slice %99 {offsets = [0, 0], sizes = [1, 1], strides = [1, 1]} : vector<1x2xf32> to vector<1x1xf32>
    %107 = vector.broadcast %106 : vector<1x1xf32> to vector<8x8xf32>
    %108 = arith.addf %105, %107 : vector<8x8xf32>
    %c0_51 = arith.constant 0 : index
    %c0_52 = arith.constant 0 : index
    %c0_53 = arith.constant 0 : index
    %c0_54 = arith.constant 0 : index
    %109 = vector.load %arg18[%c0_51, %c0_52, %c0_53, %c0_54] : memref<1x8x2x8xf32, #tpu.memory_space<vmem>>, vector<1x8x1x8xf32>
    %110 = vector.shape_cast %109 : vector<1x8x1x8xf32> to vector<8x8xf32>
    %111 = vector.shape_cast %108 : vector<8x8xf32> to vector<1x8x1x8xf32>
    tpu.vector_store %arg18[%c0_51, %c0_52, %c0_53, %c0_54], %111 {strides = array<i32>} : memref<1x8x2x8xf32, #tpu.memory_space<vmem>>, vector<1x8x1x8xf32>,
    %112 = vector.extract_strided_slice %98 {offsets = [1, 0], sizes = [1, 128], strides = [1, 1]} : vector<2x128xf32> to vector<1x128xf32>
    %113 = vector.shape_cast %112 : vector<1x128xf32> to vector<128xf32>
    %114 = vector.shape_cast %113 : vector<128xf32> to vector<1x1x128xf32>
    %115 = vector.broadcast %114 : vector<1x1x128xf32> to vector<8x8x128xf32>
    %116 = arith.mulf %97, %115 : vector<8x8x128xf32>
    %cst_55 = arith.constant dense<0.000000e+00> : vector<8x8xf32>
    %117 = vector.multi_reduction <add>, %116, %cst_55 [2] : vector<8x8x128xf32> to vector<8x8xf32>
    %118 = vector.extract_strided_slice %99 {offsets = [0, 1], sizes = [1, 1], strides = [1, 1]} : vector<1x2xf32> to vector<1x1xf32>
    %119 = vector.broadcast %118 : vector<1x1xf32> to vector<8x8xf32>
    %120 = arith.addf %117, %119 : vector<8x8xf32>
    %c0_56 = arith.constant 0 : index
    %c0_57 = arith.constant 0 : index
    %c1 = arith.constant 1 : index
    %c0_58 = arith.constant 0 : index
    %121 = vector.load %arg18[%c0_56, %c0_57, %c1, %c0_58] : memref<1x8x2x8xf32, #tpu.memory_space<vmem>>, vector<1x8x1x8xf32>
    %122 = vector.shape_cast %121 : vector<1x8x1x8xf32> to vector<8x8xf32>
    %123 = vector.shape_cast %120 : vector<8x8xf32> to vector<1x8x1x8xf32>
    tpu.vector_store %arg18[%c0_56, %c0_57, %c1, %c0_58], %123 {strides = array<i32>} : memref<1x8x2x8xf32, #tpu.memory_space<vmem>>, vector<1x8x1x8xf32>,
    return
  }
  func.func @transform_0(%arg0: i32, %arg1: i32, %arg2: i32) -> (i32, i32, i32) {
    %c0_i32 = arith.constant 0 : i32
    %c0_i32_0 = arith.constant 0 : i32
    return %arg0, %arg1, %c0_i32 : i32, i32, i32
  }
  func.func @transform_1(%arg0: i32, %arg1: i32, %arg2: i32) -> (i32, i32, i32) {
    %c0_i32 = arith.constant 0 : i32
    %c0_i32_0 = arith.constant 0 : i32
    return %arg0, %arg2, %c0_i32 : i32, i32, i32
  }
  func.func @transform_2(%arg0: i32, %arg1: i32, %arg2: i32) -> (i32, i32) {
    %c0_i32 = arith.constant 0 : i32
    %c0_i32_0 = arith.constant 0 : i32
    %c0_i32_1 = arith.constant 0 : i32
    return %c0_i32, %c0_i32_0 : i32, i32
  }
  func.func @transform_3(%arg0: i32, %arg1: i32, %arg2: i32) -> (i32, i32) {
    %c0_i32 = arith.constant 0 : i32
    %c0_i32_0 = arith.constant 0 : i32
    %c0_i32_1 = arith.constant 0 : i32
    return %c0_i32, %c0_i32_0 : i32, i32
  }
  func.func @transform_4(%arg0: i32, %arg1: i32, %arg2: i32) -> (i32, i32) {
    %c0_i32 = arith.constant 0 : i32
    %c0_i32_0 = arith.constant 0 : i32
    %c0_i32_1 = arith.constant 0 : i32
    return %c0_i32, %c0_i32_0 : i32, i32
  }
  func.func @transform_5(%arg0: i32, %arg1: i32, %arg2: i32) -> (i32, i32) {
    %c0_i32 = arith.constant 0 : i32
    %c0_i32_0 = arith.constant 0 : i32
    %c0_i32_1 = arith.constant 0 : i32
    return %c0_i32, %c0_i32_0 : i32, i32
  }
  func.func @transform_6(%arg0: i32, %arg1: i32, %arg2: i32) -> (i32, i32) {
    %c0_i32 = arith.constant 0 : i32
    %c0_i32_0 = arith.constant 0 : i32
    %c0_i32_1 = arith.constant 0 : i32
    return %c0_i32, %c0_i32_0 : i32, i32
  }
  func.func @transform_7(%arg0: i32, %arg1: i32, %arg2: i32) -> (i32, i32) {
    %c0_i32 = arith.constant 0 : i32
    %c0_i32_0 = arith.constant 0 : i32
    %c0_i32_1 = arith.constant 0 : i32
    return %c0_i32, %c0_i32_0 : i32, i32
  }
  func.func @transform_8(%arg0: i32, %arg1: i32, %arg2: i32) -> (i32, i32) {
    %c0_i32 = arith.constant 0 : i32
    %c0_i32_0 = arith.constant 0 : i32
    %c0_i32_1 = arith.constant 0 : i32
    return %c0_i32, %c0_i32_0 : i32, i32
  }
  func.func @transform_9(%arg0: i32, %arg1: i32, %arg2: i32) -> (i32, i32) {
    %c0_i32 = arith.constant 0 : i32
    %c0_i32_0 = arith.constant 0 : i32
    %c0_i32_1 = arith.constant 0 : i32
    return %c0_i32, %c0_i32_0 : i32, i32
  }
  func.func @transform_10(%arg0: i32, %arg1: i32, %arg2: i32) -> (i32, i32) {
    %c0_i32 = arith.constant 0 : i32
    %c0_i32_0 = arith.constant 0 : i32
    %c0_i32_1 = arith.constant 0 : i32
    return %c0_i32, %c0_i32_0 : i32, i32
  }
  func.func @transform_11(%arg0: i32, %arg1: i32, %arg2: i32) -> (i32, i32) {
    %c0_i32 = arith.constant 0 : i32
    %c0_i32_0 = arith.constant 0 : i32
    %c0_i32_1 = arith.constant 0 : i32
    return %c0_i32, %c0_i32_0 : i32, i32
  }
  func.func @transform_12(%arg0: i32, %arg1: i32, %arg2: i32) -> (i32, i32) {
    %c0_i32 = arith.constant 0 : i32
    %c0_i32_0 = arith.constant 0 : i32
    %c0_i32_1 = arith.constant 0 : i32
    return %c0_i32, %c0_i32_0 : i32, i32
  }
  func.func @transform_13(%arg0: i32, %arg1: i32, %arg2: i32) -> (i32, i32) {
    %c0_i32 = arith.constant 0 : i32
    %c0_i32_0 = arith.constant 0 : i32
    %c0_i32_1 = arith.constant 0 : i32
    return %c0_i32, %c0_i32_0 : i32, i32
  }
  func.func @transform_14(%arg0: i32, %arg1: i32, %arg2: i32) -> (i32, i32) {
    %c0_i32 = arith.constant 0 : i32
    %c0_i32_0 = arith.constant 0 : i32
    %c0_i32_1 = arith.constant 0 : i32
    return %c0_i32, %c0_i32_0 : i32, i32
  }
  func.func @transform_15(%arg0: i32, %arg1: i32, %arg2: i32) -> (i32, i32, i32, i32) {
    %c0_i32 = arith.constant 0 : i32
    %c0_i32_0 = arith.constant 0 : i32
    return %arg0, %arg1, %c0_i32, %arg2 : i32, i32, i32, i32
  }
}

</mosaic_0001>

<llo_original>
// kernel: tpu_custom_call.1
$region0: #{tpu_custom_call.1}
  #allocation0 [shape = 'u32[]', space=smem, size = 0x4, offset = 0x4, fixed_abs, tag = 'smem constant byte address 0x4 - core index']
  #allocation1 [shape = 'u32[72,128]{1,0:T(1,128)}', space=vmem, size = 0x9000, scoped, tag = 'internal scratch']
  %s0 = inlined_call_operand.hbm [shape: f32[2,8,64], index: 0, kind: input, shape index: {}]
  %s1 = inlined_call_operand.hbm [shape: f32[2,8,64], index: 1, kind: input, shape index: {}]
  %s2 = inlined_call_operand.vmem [shape: f32[1,64], index: 2, kind: input, shape index: {}]
  %s3 = inlined_call_operand.hbm [shape: f32[1,64], index: 3, kind: input, shape index: {}]
  %s4 = inlined_call_operand.hbm [shape: bf16[64,128], index: 4, kind: input, shape index: {}]
  %s5 = inlined_call_operand.hbm [shape: bf16[64,128], index: 5, kind: input, shape index: {}]
  %s6 = inlined_call_operand.vmem [shape: f32[1,128], index: 6, kind: input, shape index: {}]
  %s7 = inlined_call_operand.vmem [shape: f32[1,128], index: 7, kind: input, shape index: {}]
  %s8 = inlined_call_operand.vmem [shape: f32[1,128], index: 8, kind: input, shape index: {}]
  %s9 = inlined_call_operand.hbm [shape: bf16[128,128], index: 9, kind: input, shape index: {}]
  %s10 = inlined_call_operand.vmem [shape: f32[1,128], index: 10, kind: input, shape index: {}]
  %s11 = inlined_call_operand.vmem [shape: f32[1,128], index: 11, kind: input, shape index: {}]
  %s12 = inlined_call_operand.vmem [shape: f32[1,128], index: 12, kind: input, shape index: {}]
  %s13 = inlined_call_operand.vmem [shape: f32[2,128], index: 13, kind: input, shape index: {}]
  %s14 = inlined_call_operand.vmem [shape: f32[1,2], index: 14, kind: input, shape index: {}]
  %s15 = inlined_call_operand.hbm [shape: f32[2,8,2,8], index: 15, kind: output, shape index: {}]
  %s16 = sld [smem:[#allocation0]]
  $region117: #{tpu_custom_call.1} parent=0
    _
  %s18 = ssub.s32 1, %s16
  %s19 = scalar_select 0, %s18, %s16
  $region1: #{tpu_custom_call.1} parent=0
    #allocation2 [shape = 'u8[8192]{0}', space=vmem, size = 0x2000, scoped, tag = 'input window, operand 0']
    #allocation3 [shape = 's32[2]{0}', space=sflag, size = 0x8, scoped, tag = 'scoped memory for tpu_custom_call.1']
    #allocation4 [shape = 's32[2]{0}', space=sflag, size = 0x8, scoped, tag = 'scoped memory for tpu_custom_call.1']
    #allocation5 [shape = 'u8[8192]{0}', space=vmem, size = 0x2000, scoped, tag = 'input window, operand 1']
    #allocation6 [shape = 's32[2]{0}', space=sflag, size = 0x8, scoped, tag = 'scoped memory for tpu_custom_call.1']
    #allocation7 [shape = 'u8[512]{0}', space=vmem, size = 0x400, scoped, tag = 'input window, operand 3, single buffered']
    #allocation8 [shape = 'u8[16384]{0}', space=vmem, size = 0x4000, scoped, tag = 'input window, operand 4, single buffered']
    #allocation9 [shape = 's32[1]{0}', space=sflag, size = 0x4, scoped, tag = 'scoped memory for tpu_custom_call.1']
    #allocation10 [shape = 'u8[16384]{0}', space=vmem, size = 0x4000, scoped, tag = 'input window, operand 5, single buffered']
    #allocation11 [shape = 'u8[32768]{0}', space=vmem, size = 0x8000, scoped, tag = 'input window, operand 9, single buffered']
    #allocation12 [shape = 's32[1]{0}', space=sflag, size = 0x4, scoped, tag = 'scoped memory for tpu_custom_call.1']
    #allocation13 [shape = 'u8[16384]{0}', space=vmem, size = 0x4000, scoped, tag = 'output window, operand 0']
    %20 = vsyncpa [#allocation3], 0
    %s21 = scalar_lea.sflag [#allocation3], 1
    %22 = vsyncpa %s21, 0
    %23 = vsyncpa [#allocation6], 0
    %s24 = scalar_lea.sflag [#allocation6], 1
    %25 = vsyncpa %s24, 0
    %26 = vsyncpa [#allocation9], 0
    %27 = vsyncpa [#allocation12], 0
    %28 = vsyncpa [#allocation4], 0
    %s29 = scalar_lea.sflag [#allocation4], 1
    %30 = vsyncpa %s29, 0
    loop: start=0, step=1, limit=4
    $region2: #{tpu_custom_call.1} parent=1 // loop_pre_header
      _
    $region3: #{tpu_custom_call.1} parent=1 // loop_header
      %s32 = sphi 0, %s36
      %p33 = scmp.ge.s32.totalorder %s32, 4
      %s39 = sphi 0, %s58
      %s40 = sphi 0, %s54
      %s41 = sphi 0, %s50
      %s42 = sphi 0, %s39
      %s43 = sphi 0, %s40
      %s44 = sphi 0, %s41
      %s45 = sphi 0, %s42
      %s46 = sphi 0, %s43
      %s47 = sphi 0, %s44
      %s63 = sphi 0, %s65
      %s66 = sphi 0, %s63
      %s67 = sphi 0, %s66
      %s83 = sphi 0, %s67
      %s91 = sphi 0, %s93
      %s94 = sphi 0, %s91
      %s95 = sphi 0, %s94
      %s111 = sphi 0, %s95
      %s115 = sphi 0, %s115
      %s117 = sphi 0, %s115
      %s118 = sphi 0, %s117
      %s132 = sphi 0, %s118
      %s136 = sphi 0, %s136
      %s138 = sphi 0, %s136
      %s139 = sphi 0, %s138
      %s153 = sphi 0, %s139
      %s157 = sphi 0, %s157
      %s159 = sphi 0, %s157
      %s160 = sphi 0, %s159
      %s174 = sphi 0, %s160
      %s178 = sphi 0, %s178
      %s180 = sphi 0, %s178
      %s181 = sphi 0, %s180
      %s195 = sphi 0, %s181
      %s199 = sphi 0, %s199
      %s201 = sphi 0, %s199
      %s202 = sphi 0, %s201
      %s216 = sphi 0, %s202
      %s220 = sphi 0, %s220
      %s222 = sphi 0, %s220
      %s223 = sphi 0, %s222
      %s237 = sphi 0, %s223
      %s241 = sphi 0, %s241
      %s243 = sphi 0, %s241
      %s244 = sphi 0, %s243
      %s258 = sphi 0, %s244
      %s262 = sphi 0, %s262
      %s264 = sphi 0, %s262
      %s265 = sphi 0, %s264
      %s279 = sphi 0, %s265
      %s283 = sphi 0, %s283
      %s285 = sphi 0, %s283
      %s286 = sphi 0, %s285
      %s300 = sphi 0, %s286
      %s304 = sphi 0, %s304
      %s306 = sphi 0, %s304
      %s307 = sphi 0, %s306
      %s321 = sphi 0, %s307
      %s325 = sphi 0, %s325
      %s327 = sphi 0, %s325
      %s328 = sphi 0, %s327
      %s342 = sphi 0, %s328
      %s346 = sphi 0, %s346
      %s348 = sphi 0, %s346
      %s349 = sphi 0, %s348
      %s363 = sphi 0, %s349
      %s367 = sphi 0, %s367
      %s369 = sphi 0, %s367
      %s370 = sphi 0, %s369
      %s384 = sphi 0, %s370
      %s394 = sphi 0, %s396
      %s397 = sphi 0, %s394
      %s398 = sphi 0, %s397
      %s414 = sphi 0, %s398
    $region4: #{tpu_custom_call.1} parent=1 // loop_header_branch
      %35 = sbr.rel (%p33) target = $region8
    $region5: #{tpu_custom_call.1} parent=1 // loop_body
      %s37 = ssub.s32 %s32, 1
      %s38 = ssub.s32 %s32, 2
      %s48 = sadd.s32 1, %s41
      %p49 = scmp.ge.s32.totalorder %s48, 1
      %s50 = scalar_select %p49, 0, %s48
      %s51 = sadd.s32 1, %s40
      %s52 = scalar_select %p49, %s51, %s40
      %p53 = scmp.ge.s32.totalorder %s52, 1
      %s54 = scalar_select %p53, 0, %s52
      %s55 = sadd.s32 1, %s39
      %s56 = scalar_select %p53, %s55, %s39
      %p57 = scmp.ge.s32.totalorder %s56, 2
      %s58 = scalar_select %p57, 0, %s56
      %s59 = ssub.s32 %s39, %s58
      %s60 = ssub.s32 %s40, %s54
      %s61 = sor.u32 %s59, %s60
      %p62 = scmp.eq.s32.totalorder %s61, 0
      %s64 = sadd.s32 %s63, 1
      %s65 = scalar_select %p62, %s63, %s64
      %p68 = pneg %p62
      %p69 = scmp.eq.s32.totalorder %s32, 1
      %p70 = por %p68, %p69
      %p71 = scmp.ne.s32.totalorder %s63, %s66
      %p72 = scmp.eq.s32.totalorder %s32, 0
      %p73 = por %p71, %p72
      %p74 = scmp.ne.s32.totalorder %s63, %s66
      %p75 = scmp.eq.s32.totalorder %s37, 1
      %p76 = por %p74, %p75
      %p77 = scmp.ne.s32.totalorder %s66, %s67
      %p78 = scmp.eq.s32.totalorder %s37, 0
      %p79 = por %p77, %p78
      %p80 = scmp.ne.s32.totalorder %s66, %s67
      %p81 = scmp.eq.s32.totalorder %s38, 1
      %p82 = por %p80, %p81
      %p84 = scmp.ne.s32.totalorder %s67, %s83
      %p85 = scmp.eq.s32.totalorder %s38, 0
      %p86 = por %p84, %p85
      %s87 = ssub.s32 %s39, %s58
      %s88 = ssub.s32 %s41, %s50
      %s89 = sor.u32 %s87, %s88
      %p90 = scmp.eq.s32.totalorder %s89, 0
      %s92 = sadd.s32 %s91, 1
      %s93 = scalar_select %p90, %s91, %s92
      %p96 = pneg %p90
      %p97 = scmp.eq.s32.totalorder %s32, 1
      %p98 = por %p96, %p97
      %p99 = scmp.ne.s32.totalorder %s91, %s94
      %p100 = scmp.eq.s32.totalorder %s32, 0
      %p101 = por %p99, %p100
      %p102 = scmp.ne.s32.totalorder %s91, %s94
      %p103 = scmp.eq.s32.totalorder %s37, 1
      %p104 = por %p102, %p103
      %p105 = scmp.ne.s32.totalorder %s94, %s95
      %p106 = scmp.eq.s32.totalorder %s37, 0
      %p107 = por %p105, %p106
      %p108 = scmp.ne.s32.totalorder %s94, %s95
      %p109 = scmp.eq.s32.totalorder %s38, 1
      %p110 = por %p108, %p109
      %p112 = scmp.ne.s32.totalorder %s95, %s111
      %p113 = scmp.eq.s32.totalorder %s38, 0
      %p114 = por %p112, %p113
      %s116 = sadd.s32 %s115, 1
      %p119 = scmp.eq.s32.totalorder %s32, 1
      %p120 = scmp.ne.s32.totalorder %s115, %s117
      %p121 = scmp.eq.s32.totalorder %s32, 0
      %p122 = por %p120, %p121
      %p123 = scmp.ne.s32.totalorder %s115, %s117
      %p124 = scmp.eq.s32.totalorder %s37, 1
      %p125 = por %p123, %p124
      %p126 = scmp.ne.s32.totalorder %s117, %s118
      %p127 = scmp.eq.s32.totalorder %s37, 0
      %p128 = por %p126, %p127
      %p129 = scmp.ne.s32.totalorder %s117, %s118
      %p130 = scmp.eq.s32.totalorder %s38, 1
      %p131 = por %p129, %p130
      %p133 = scmp.ne.s32.totalorder %s118, %s132
      %p134 = scmp.eq.s32.totalorder %s38, 0
      %p135 = por %p133, %p134
      %s137 = sadd.s32 %s136, 1
      %p140 = scmp.eq.s32.totalorder %s32, 1
      %p141 = scmp.ne.s32.totalorder %s136, %s138
      %p142 = scmp.eq.s32.totalorder %s32, 0
      %p143 = por %p141, %p142
      %p144 = scmp.ne.s32.totalorder %s136, %s138
      %p145 = scmp.eq.s32.totalorder %s37, 1
      %p146 = por %p144, %p145
      %p147 = scmp.ne.s32.totalorder %s138, %s139
      %p148 = scmp.eq.s32.totalorder %s37, 0
      %p149 = por %p147, %p148
      %p150 = scmp.ne.s32.totalorder %s138, %s139
      %p151 = scmp.eq.s32.totalorder %s38, 1
      %p152 = por %p150, %p151
      %p154 = scmp.ne.s32.totalorder %s139, %s153
      %p155 = scmp.eq.s32.totalorder %s38, 0
      %p156 = por %p154, %p155
      %s158 = sadd.s32 %s157, 1
      %p161 = scmp.eq.s32.totalorder %s32, 1
      %p162 = scmp.ne.s32.totalorder %s157, %s159
      %p163 = scmp.eq.s32.totalorder %s32, 0
      %p164 = por %p162, %p163
      %p165 = scmp.ne.s32.totalorder %s157, %s159
      %p166 = scmp.eq.s32.totalorder %s37, 1
      %p167 = por %p165, %p166
      %p168 = scmp.ne.s32.totalorder %s159, %s160
      %p169 = scmp.eq.s32.totalorder %s37, 0
      %p170 = por %p168, %p169
      %p171 = scmp.ne.s32.totalorder %s159, %s160
      %p172 = scmp.eq.s32.totalorder %s38, 1
      %p173 = por %p171, %p172
      %p175 = scmp.ne.s32.totalorder %s160, %s174
      %p176 = scmp.eq.s32.totalorder %s38, 0
      %p177 = por %p175, %p176
      %s179 = sadd.s32 %s178, 1
      %p182 = scmp.eq.s32.totalorder %s32, 1
      %p183 = scmp.ne.s32.totalorder %s178, %s180
      %p184 = scmp.eq.s32.totalorder %s32, 0
      %p185 = por %p183, %p184
      %p186 = scmp.ne.s32.totalorder %s178, %s180
      %p187 = scmp.eq.s32.totalorder %s37, 1
      %p188 = por %p186, %p187
      %p189 = scmp.ne.s32.totalorder %s180, %s181
      %p190 = scmp.eq.s32.totalorder %s37, 0
      %p191 = por %p189, %p190
      %p192 = scmp.ne.s32.totalorder %s180, %s181
      %p193 = scmp.eq.s32.totalorder %s38, 1
      %p194 = por %p192, %p193
      %p196 = scmp.ne.s32.totalorder %s181, %s195
      %p197 = scmp.eq.s32.totalorder %s38, 0
      %p198 = por %p196, %p197
      %s200 = sadd.s32 %s199, 1
      %p203 = scmp.eq.s32.totalorder %s32, 1
      %p204 = scmp.ne.s32.totalorder %s199, %s201
      %p205 = scmp.eq.s32.totalorder %s32, 0
      %p206 = por %p204, %p205
      %p207 = scmp.ne.s32.totalorder %s199, %s201
      %p208 = scmp.eq.s32.totalorder %s37, 1
      %p209 = por %p207, %p208
      %p210 = scmp.ne.s32.totalorder %s201, %s202
      %p211 = scmp.eq.s32.totalorder %s37, 0
      %p212 = por %p210, %p211
      %p213 = scmp.ne.s32.totalorder %s201, %s202
      %p214 = scmp.eq.s32.totalorder %s38, 1
      %p215 = por %p213, %p214
      %p217 = scmp.ne.s32.totalorder %s202, %s216
      %p218 = scmp.eq.s32.totalorder %s38, 0
      %p219 = por %p217, %p218
      %s221 = sadd.s32 %s220, 1
      %p224 = scmp.eq.s32.totalorder %s32, 1
      %p225 = scmp.ne.s32.totalorder %s220, %s222
      %p226 = scmp.eq.s32.totalorder %s32, 0
      %p227 = por %p225, %p226
      %p228 = scmp.ne.s32.totalorder %s220, %s222
      %p229 = scmp.eq.s32.totalorder %s37, 1
      %p230 = por %p228, %p229
      %p231 = scmp.ne.s32.totalorder %s222, %s223
      %p232 = scmp.eq.s32.totalorder %s37, 0
      %p233 = por %p231, %p232
      %p234 = scmp.ne.s32.totalorder %s222, %s223
      %p235 = scmp.eq.s32.totalorder %s38, 1
      %p236 = por %p234, %p235
      %p238 = scmp.ne.s32.totalorder %s223, %s237
      %p239 = scmp.eq.s32.totalorder %s38, 0
      %p240 = por %p238, %p239
      %s242 = sadd.s32 %s241, 1
      %p245 = scmp.eq.s32.totalorder %s32, 1
      %p246 = scmp.ne.s32.totalorder %s241, %s243
      %p247 = scmp.eq.s32.totalorder %s32, 0
      %p248 = por %p246, %p247
      %p249 = scmp.ne.s32.totalorder %s241, %s243
      %p250 = scmp.eq.s32.totalorder %s37, 1
      %p251 = por %p249, %p250
      %p252 = scmp.ne.s32.totalorder %s243, %s244
      %p253 = scmp.eq.s32.totalorder %s37, 0
      %p254 = por %p252, %p253
      %p255 = scmp.ne.s32.totalorder %s243, %s244
      %p256 = scmp.eq.s32.totalorder %s38, 1
      %p257 = por %p255, %p256
      %p259 = scmp.ne.s32.totalorder %s244, %s258
      %p260 = scmp.eq.s32.totalorder %s38, 0
      %p261 = por %p259, %p260
      %s263 = sadd.s32 %s262, 1
      %p266 = scmp.eq.s32.totalorder %s32, 1
      %p267 = scmp.ne.s32.totalorder %s262, %s264
      %p268 = scmp.eq.s32.totalorder %s32, 0
      %p269 = por %p267, %p268
      %p270 = scmp.ne.s32.totalorder %s262, %s264
      %p271 = scmp.eq.s32.totalorder %s37, 1
      %p272 = por %p270, %p271
      %p273 = scmp.ne.s32.totalorder %s264, %s265
      %p274 = scmp.eq.s32.totalorder %s37, 0
      %p275 = por %p273, %p274
      %p276 = scmp.ne.s32.totalorder %s264, %s265
      %p277 = scmp.eq.s32.totalorder %s38, 1
      %p278 = por %p276, %p277
      %p280 = scmp.ne.s32.totalorder %s265, %s279
      %p281 = scmp.eq.s32.totalorder %s38, 0
      %p282 = por %p280, %p281
      %s284 = sadd.s32 %s283, 1
      %p287 = scmp.eq.s32.totalorder %s32, 1
      %p288 = scmp.ne.s32.totalorder %s283, %s285
      %p289 = scmp.eq.s32.totalorder %s32, 0
      %p290 = por %p288, %p289
      %p291 = scmp.ne.s32.totalorder %s283, %s285
      %p292 = scmp.eq.s32.totalorder %s37, 1
      %p293 = por %p291, %p292
      %p294 = scmp.ne.s32.totalorder %s285, %s286
      %p295 = scmp.eq.s32.totalorder %s37, 0
      %p296 = por %p294, %p295
      %p297 = scmp.ne.s32.totalorder %s285, %s286
      %p298 = scmp.eq.s32.totalorder %s38, 1
      %p299 = por %p297, %p298
      %p301 = scmp.ne.s32.totalorder %s286, %s300
      %p302 = scmp.eq.s32.totalorder %s38, 0
      %p303 = por %p301, %p302
      %s305 = sadd.s32 %s304, 1
      %p308 = scmp.eq.s32.totalorder %s32, 1
      %p309 = scmp.ne.s32.totalorder %s304, %s306
      %p310 = scmp.eq.s32.totalorder %s32, 0
      %p311 = por %p309, %p310
      %p312 = scmp.ne.s32.totalorder %s304, %s306
      %p313 = scmp.eq.s32.totalorder %s37, 1
      %p314 = por %p312, %p313
      %p315 = scmp.ne.s32.totalorder %s306, %s307
      %p316 = scmp.eq.s32.totalorder %s37, 0
      %p317 = por %p315, %p316
      %p318 = scmp.ne.s32.totalorder %s306, %s307
      %p319 = scmp.eq.s32.totalorder %s38, 1
      %p320 = por %p318, %p319
      %p322 = scmp.ne.s32.totalorder %s307, %s321
      %p323 = scmp.eq.s32.totalorder %s38, 0
      %p324 = por %p322, %p323
      %s326 = sadd.s32 %s325, 1
      %p329 = scmp.eq.s32.totalorder %s32, 1
      %p330 = scmp.ne.s32.totalorder %s325, %s327
      %p331 = scmp.eq.s32.totalorder %s32, 0
      %p332 = por %p330, %p331
      %p333 = scmp.ne.s32.totalorder %s325, %s327
      %p334 = scmp.eq.s32.totalorder %s37, 1
      %p335 = por %p333, %p334
      %p336 = scmp.ne.s32.totalorder %s327, %s328
      %p337 = scmp.eq.s32.totalorder %s37, 0
      %p338 = por %p336, %p337
      %p339 = scmp.ne.s32.totalorder %s327, %s328
      %p340 = scmp.eq.s32.totalorder %s38, 1
      %p341 = por %p339, %p340
      %p343 = scmp.ne.s32.totalorder %s328, %s342
      %p344 = scmp.eq.s32.totalorder %s38, 0
      %p345 = por %p343, %p344
      %s347 = sadd.s32 %s346, 1
      %p350 = scmp.eq.s32.totalorder %s32, 1
      %p351 = scmp.ne.s32.totalorder %s346, %s348
      %p352 = scmp.eq.s32.totalorder %s32, 0
      %p353 = por %p351, %p352
      %p354 = scmp.ne.s32.totalorder %s346, %s348
      %p355 = scmp.eq.s32.totalorder %s37, 1
      %p356 = por %p354, %p355
      %p357 = scmp.ne.s32.totalorder %s348, %s349
      %p358 = scmp.eq.s32.totalorder %s37, 0
      %p359 = por %p357, %p358
      %p360 = scmp.ne.s32.totalorder %s348, %s349
      %p361 = scmp.eq.s32.totalorder %s38, 1
      %p362 = por %p360, %p361
      %p364 = scmp.ne.s32.totalorder %s349, %s363
      %p365 = scmp.eq.s32.totalorder %s38, 0
      %p366 = por %p364, %p365
      %s368 = sadd.s32 %s367, 1
      %p371 = scmp.eq.s32.totalorder %s32, 1
      %p372 = scmp.ne.s32.totalorder %s367, %s369
      %p373 = scmp.eq.s32.totalorder %s32, 0
      %p374 = por %p372, %p373
      %p375 = scmp.ne.s32.totalorder %s367, %s369
      %p376 = scmp.eq.s32.totalorder %s37, 1
      %p377 = por %p375, %p376
      %p378 = scmp.ne.s32.totalorder %s369, %s370
      %p379 = scmp.eq.s32.totalorder %s37, 0
      %p380 = por %p378, %p379
      %p381 = scmp.ne.s32.totalorder %s369, %s370
      %p382 = scmp.eq.s32.totalorder %s38, 1
      %p383 = por %p381, %p382
      %p385 = scmp.ne.s32.totalorder %s370, %s384
      %p386 = scmp.eq.s32.totalorder %s38, 0
      %p387 = por %p385, %p386
      %s388 = ssub.s32 %s39, %s58
      %s389 = ssub.s32 %s40, %s54
      %s390 = sor.u32 %s388, %s389
      %s391 = ssub.s32 %s41, %s50
      %s392 = sor.u32 %s390, %s391
      %p393 = scmp.eq.s32.totalorder %s392, 0
      %s395 = sadd.s32 %s394, 1
      %s396 = scalar_select %p393, %s394, %s395
      %p399 = pneg %p393
      %p400 = scmp.eq.s32.totalorder %s32, 1
      %p401 = por %p399, %p400
      %p402 = scmp.ne.s32.totalorder %s394, %s397
      %p403 = scmp.eq.s32.totalorder %s32, 0
      %p404 = por %p402, %p403
      %p405 = scmp.ne.s32.totalorder %s394, %s397
      %p406 = scmp.eq.s32.totalorder %s37, 1
      %p407 = por %p405, %p406
      %p408 = scmp.ne.s32.totalorder %s397, %s398
      %p409 = scmp.eq.s32.totalorder %s37, 0
      %p410 = por %p408, %p409
      %p411 = scmp.ne.s32.totalorder %s397, %s398
      %p412 = scmp.eq.s32.totalorder %s38, 1
      %p413 = por %p411, %p412
      %p415 = scmp.ne.s32.totalorder %s398, %s414
      %p416 = scmp.eq.s32.totalorder %s38, 0
      %p417 = por %p415, %p416
      %p418 = scmp.le.s32.totalorder 1, %s32
      %p419 = scmp.lt.s32.totalorder %s32, 3
      %p420 = pnand %p418, %p419
      %p421 = pneg %p420
      // Predicated region
      $region9: #{tpu_custom_call.1} parent=5 // pred_check
        _
      $region10: #{tpu_custom_call.1} parent=5 // pred_check_branch
        %423 = sbr.rel (%p420) target = $region12
      $region11: #{tpu_custom_call.1} parent=5 // pred_region
        %s424 = ssub.s32 %s32, 1
        // Predicated region
        $region13: #{tpu_custom_call.1} parent=11 // pred_check
          %p425 = pneg %p128
        $region14: #{tpu_custom_call.1} parent=11 // pred_check_branch
          %427 = sbr.rel (%p425) target = $region16
        $region15: #{tpu_custom_call.1} parent=11 // pred_region
          _
        $region16: #{tpu_custom_call.1} parent=11 // pred_fallthru
          _
        // Predicated region
        $region17: #{tpu_custom_call.1} parent=11 // pred_check
          %p428 = pneg %p149
        $region18: #{tpu_custom_call.1} parent=11 // pred_check_branch
          %430 = sbr.rel (%p428) target = $region20
        $region19: #{tpu_custom_call.1} parent=11 // pred_region
          %432 = vsyncadd [#allocation6], 0
          %s434 = sshll.u32 %s3, 4
          %s435 = int_to_ptr.hbm [resolvable:$true] %s434
          %s436 = sshll.u32 [#allocation7], 4
          %s437 = int_to_ptr.vmem [resolvable:$true] %s436
          %439 = dma.hbm_to_vmem [thread:$0]  %s435, 16, %s437, [#allocation6]
        $region20: #{tpu_custom_call.1} parent=11 // pred_fallthru
          _
        // Predicated region
        $region21: #{tpu_custom_call.1} parent=11 // pred_check
          %p440 = pneg %p170
        $region22: #{tpu_custom_call.1} parent=11 // pred_check_branch
          %442 = sbr.rel (%p440) target = $region24
        $region23: #{tpu_custom_call.1} parent=11 // pred_region
          %444 = vsyncadd [#allocation9], 0
          %s445 = sshll.u32 %s4, 4
          %s446 = int_to_ptr.hbm [resolvable:$true] %s445
          %s447 = sshll.u32 [#allocation8], 4
          %s448 = int_to_ptr.vmem [resolvable:$true] %s447
          %453 = dma.hbm_to_vmem [thread:$0]  %s446, 512, %s448, [#allocation9], 64, 64, 4
        $region24: #{tpu_custom_call.1} parent=11 // pred_fallthru
          _
        // Predicated region
        $region25: #{tpu_custom_call.1} parent=11 // pred_check
          %p454 = pneg %p191
        $region26: #{tpu_custom_call.1} parent=11 // pred_check_branch
          %456 = sbr.rel (%p454) target = $region28
        $region27: #{tpu_custom_call.1} parent=11 // pred_region
          %458 = vsyncadd [#allocation9], 0
          %s459 = sshll.u32 %s5, 4
          %s460 = int_to_ptr.hbm [resolvable:$true] %s459
          %s461 = sshll.u32 [#allocation10], 4
          %s462 = int_to_ptr.vmem [resolvable:$true] %s461
          %467 = dma.hbm_to_vmem [thread:$0]  %s460, 512, %s462, [#allocation9], 64, 64, 4
        $region28: #{tpu_custom_call.1} parent=11 // pred_fallthru
          _
        // Predicated region
        $region29: #{tpu_custom_call.1} parent=11 // pred_check
          %p468 = pneg %p212
        $region30: #{tpu_custom_call.1} parent=11 // pred_check_branch
          %470 = sbr.rel (%p468) target = $region32
        $region31: #{tpu_custom_call.1} parent=11 // pred_region
          _
        $region32: #{tpu_custom_call.1} parent=11 // pred_fallthru
          _
        // Predicated region
        $region33: #{tpu_custom_call.1} parent=11 // pred_check
          %p471 = pneg %p233
        $region34: #{tpu_custom_call.1} parent=11 // pred_check_branch
          %473 = sbr.rel (%p471) target = $region36
        $region35: #{tpu_custom_call.1} parent=11 // pred_region
          _
        $region36: #{tpu_custom_call.1} parent=11 // pred_fallthru
          _
        // Predicated region
        $region37: #{tpu_custom_call.1} parent=11 // pred_check
          %p474 = pneg %p254
        $region38: #{tpu_custom_call.1} parent=11 // pred_check_branch
          %476 = sbr.rel (%p474) target = $region40
        $region39: #{tpu_custom_call.1} parent=11 // pred_region
          _
        $region40: #{tpu_custom_call.1} parent=11 // pred_fallthru
          _
        // Predicated region
        $region41: #{tpu_custom_call.1} parent=11 // pred_check
          %p477 = pneg %p275
        $region42: #{tpu_custom_call.1} parent=11 // pred_check_branch
          %479 = sbr.rel (%p477) target = $region44
        $region43: #{tpu_custom_call.1} parent=11 // pred_region
          %481 = vsyncadd [#allocation12], 0
          %s482 = sshll.u32 %s9, 4
          %s483 = int_to_ptr.hbm [resolvable:$true] %s482
          %s484 = sshll.u32 [#allocation11], 4
          %s485 = int_to_ptr.vmem [resolvable:$true] %s484
          %490 = dma.hbm_to_vmem [thread:$0]  %s483, 1024, %s485, [#allocation12], 64, 64, 4
        $region44: #{tpu_custom_call.1} parent=11 // pred_fallthru
          _
        // Predicated region
        $region45: #{tpu_custom_call.1} parent=11 // pred_check
          %p491 = pneg %p296
        $region46: #{tpu_custom_call.1} parent=11 // pred_check_branch
          %493 = sbr.rel (%p491) target = $region48
        $region47: #{tpu_custom_call.1} parent=11 // pred_region
          _
        $region48: #{tpu_custom_call.1} parent=11 // pred_fallthru
          _
        // Predicated region
        $region49: #{tpu_custom_call.1} parent=11 // pred_check
          %p494 = pneg %p317
        $region50: #{tpu_custom_call.1} parent=11 // pred_check_branch
          %496 = sbr.rel (%p494) target = $region52
        $region51: #{tpu_custom_call.1} parent=11 // pred_region
          _
        $region52: #{tpu_custom_call.1} parent=11 // pred_fallthru
          _
        // Predicated region
        $region53: #{tpu_custom_call.1} parent=11 // pred_check
          %p497 = pneg %p338
        $region54: #{tpu_custom_call.1} parent=11 // pred_check_branch
          %499 = sbr.rel (%p497) target = $region56
        $region55: #{tpu_custom_call.1} parent=11 // pred_region
          _
        $region56: #{tpu_custom_call.1} parent=11 // pred_fallthru
          _
        // Predicated region
        $region57: #{tpu_custom_call.1} parent=11 // pred_check
          %p500 = pneg %p359
        $region58: #{tpu_custom_call.1} parent=11 // pred_check_branch
          %502 = sbr.rel (%p500) target = $region60
        $region59: #{tpu_custom_call.1} parent=11 // pred_region
          _
        $region60: #{tpu_custom_call.1} parent=11 // pred_fallthru
          _
        // Predicated region
        $region61: #{tpu_custom_call.1} parent=11 // pred_check
          %p503 = pneg %p380
        $region62: #{tpu_custom_call.1} parent=11 // pred_check_branch
          %505 = sbr.rel (%p503) target = $region64
        $region63: #{tpu_custom_call.1} parent=11 // pred_region
          _
        $region64: #{tpu_custom_call.1} parent=11 // pred_fallthru
          _
      $region12: #{tpu_custom_call.1} parent=5 // pred_fallthru
        _
      %p506 = scmp.lt.s32.totalorder %s32, 2
      // Predicated region
      $region65: #{tpu_custom_call.1} parent=5 // pred_check
        %p507 = pneg %p506
      $region66: #{tpu_custom_call.1} parent=5 // pred_check_branch
        %509 = sbr.rel (%p507) target = $region68
      $region67: #{tpu_custom_call.1} parent=5 // pred_region
        // Predicated region
        $region69: #{tpu_custom_call.1} parent=67 // pred_check
          %p510 = pneg %p73
        $region70: #{tpu_custom_call.1} parent=67 // pred_check_branch
          %512 = sbr.rel (%p510) target = $region72
        $region71: #{tpu_custom_call.1} parent=67 // pred_region
          %s513 = sand.u32 %s63, 1
          %s514 = scalar_lea.sflag [#allocation3], %s513
          %s515 = sand.u32 %s63, 1
          %s516 = smul.addr %s515, 8
          %s517 = scalar_lea.vmem [#allocation2], %s516
          %519 = vsyncadd %s514, 0
          %s520 = sadd.s32 %s40, %s39
          %s521 = smul.addr %s520, 8
          %s522 = scalar_lea.hbm %s0, %s521
          %s524 = sshll.u32 %s522, 4
          %s525 = int_to_ptr.hbm [resolvable:$true] %s524
          %s526 = sshll.u32 %s517, 4
          %s527 = int_to_ptr.vmem [resolvable:$true] %s526
          %529 = dma.hbm_to_vmem [thread:$0]  %s525, 128, %s527, %s514
        $region72: #{tpu_custom_call.1} parent=67 // pred_fallthru
          _
        // Predicated region
        $region73: #{tpu_custom_call.1} parent=67 // pred_check
          %p530 = pneg %p101
        $region74: #{tpu_custom_call.1} parent=67 // pred_check_branch
          %532 = sbr.rel (%p530) target = $region76
        $region75: #{tpu_custom_call.1} parent=67 // pred_region
          %s533 = sand.u32 %s32, 1
          %s534 = scalar_lea.sflag [#allocation6], %s533
          %s535 = sand.u32 %s91, 1
          %s536 = smul.addr %s535, 8
          %s537 = scalar_lea.vmem [#allocation5], %s536
          %539 = vsyncadd %s534, 0
          %s540 = sadd.s32 %s41, %s39
          %s541 = smul.addr %s540, 8
          %s542 = scalar_lea.hbm %s1, %s541
          %s544 = sshll.u32 %s542, 4
          %s545 = int_to_ptr.hbm [resolvable:$true] %s544
          %s546 = sshll.u32 %s537, 4
          %s547 = int_to_ptr.vmem [resolvable:$true] %s546
          %549 = dma.hbm_to_vmem [thread:$0]  %s545, 128, %s547, %s534
        $region76: #{tpu_custom_call.1} parent=67 // pred_fallthru
          _
      $region68: #{tpu_custom_call.1} parent=5 // pred_fallthru
        _
      %p550 = scmp.le.s32.totalorder 1, %s32
      %p551 = scmp.lt.s32.totalorder %s32, 3
      %p552 = pnand %p550, %p551
      %p553 = pneg %p552
      // Predicated region
      $region77: #{tpu_custom_call.1} parent=5 // pred_check
        _
      $region78: #{tpu_custom_call.1} parent=5 // pred_check_branch
        %555 = sbr.rel (%p552) target = $region80
      $region79: #{tpu_custom_call.1} parent=5 // pred_region
        %s556 = ssub.s32 %s32, 1
        %s557 = sand.u32 %s66, 1
        %s558 = scalar_lea.sflag [#allocation3], %s557
        %s559 = sand.u32 %s66, 1
        %s560 = smul.addr %s559, 8
        %s561 = scalar_lea.vmem [#allocation2], %s560
        // Predicated region
        $region81: #{tpu_custom_call.1} parent=79 // pred_check
          %p562 = pneg %p79
        $region82: #{tpu_custom_call.1} parent=79 // pred_check_branch
          %564 = sbr.rel (%p562) target = $region84
        $region83: #{tpu_custom_call.1} parent=79 // pred_region
          %566 = dma.done %s558, 128
        $region84: #{tpu_custom_call.1} parent=79 // pred_fallthru
          _
        %s567 = sand.u32 %s37, 1
        %s568 = scalar_lea.sflag [#allocation6], %s567
        %s569 = sand.u32 %s94, 1
        %s570 = smul.addr %s569, 8
        %s571 = scalar_lea.vmem [#allocation5], %s570
        // Predicated region
        $region85: #{tpu_custom_call.1} parent=79 // pred_check
          %p572 = pneg %p107
        $region86: #{tpu_custom_call.1} parent=79 // pred_check_branch
          %574 = sbr.rel (%p572) target = $region88
        $region87: #{tpu_custom_call.1} parent=79 // pred_region
          %576 = dma.done %s568, 128
        $region88: #{tpu_custom_call.1} parent=79 // pred_fallthru
          _
        // Predicated region
        $region89: #{tpu_custom_call.1} parent=79 // pred_check
          %p577 = pneg %p149
        $region90: #{tpu_custom_call.1} parent=79 // pred_check_branch
          %579 = sbr.rel (%p577) target = $region92
        $region91: #{tpu_custom_call.1} parent=79 // pred_region
          %581 = dma.done [#allocation6], 16
        $region92: #{tpu_custom_call.1} parent=79 // pred_fallthru
          _
        // Predicated region
        $region93: #{tpu_custom_call.1} parent=79 // pred_check
          %p582 = pneg %p170
        $region94: #{tpu_custom_call.1} parent=79 // pred_check_branch
          %584 = sbr.rel (%p582) target = $region96
        $region95: #{tpu_custom_call.1} parent=79 // pred_region
          %586 = dma.done [#allocation9], 512
        $region96: #{tpu_custom_call.1} parent=79 // pred_fallthru
          _
        // Predicated region
        $region97: #{tpu_custom_call.1} parent=79 // pred_check
          %p587 = pneg %p191
        $region98: #{tpu_custom_call.1} parent=79 // pred_check_branch
          %589 = sbr.rel (%p587) target = $region100
        $region99: #{tpu_custom_call.1} parent=79 // pred_region
          %591 = dma.done [#allocation9], 512
        $region100: #{tpu_custom_call.1} parent=79 // pred_fallthru
          _
        // Predicated region
        $region101: #{tpu_custom_call.1} parent=79 // pred_check
          %p592 = pneg %p275
        $region102: #{tpu_custom_call.1} parent=79 // pred_check_branch
          %594 = sbr.rel (%p592) target = $region104
        $region103: #{tpu_custom_call.1} parent=79 // pred_region
          %596 = dma.done [#allocation12], 1024
        $region104: #{tpu_custom_call.1} parent=79 // pred_fallthru
          _
        %s597 = sand.u32 %s66, 1
        %s598 = scalar_lea.sflag [#allocation3], %s597
        %s599 = sand.u32 %s66, 1
        %s600 = smul.addr %s599, 8
        %s601 = scalar_lea.vmem [#allocation2], %s600
        %p602 = pneg %p79
        %p603 = pneg %p76
        %s604 = sand.u32 %s37, 1
        %s605 = scalar_lea.sflag [#allocation6], %s604
        %s606 = sand.u32 %s94, 1
        %s607 = smul.addr %s606, 8
        %s608 = scalar_lea.vmem [#allocation5], %s607
        %p609 = pneg %p107
        %p610 = pneg %p104
        %p611 = pneg %p128
        %p612 = pneg %p125
        %p613 = pneg %p149
        %p614 = pneg %p146
        %p615 = pneg %p170
        %p616 = pneg %p167
        %p617 = pneg %p191
        %p618 = pneg %p188
        %p619 = pneg %p212
        %p620 = pneg %p209
        %p621 = pneg %p233
        %p622 = pneg %p230
        %p623 = pneg %p254
        %p624 = pneg %p251
        %p625 = pneg %p275
        %p626 = pneg %p272
        %p627 = pneg %p296
        %p628 = pneg %p293
        %p629 = pneg %p317
        %p630 = pneg %p314
        %p631 = pneg %p338
        %p632 = pneg %p335
        %p633 = pneg %p359
        %p634 = pneg %p356
        %p635 = pneg %p380
        %p636 = pneg %p377
        %p637 = pneg %p410
        %p638 = pneg %p407
        %s639 = sand.u32 %s397, 1
        %s640 = scalar_lea.sflag [#allocation4], %s639
        %s641 = sand.u32 %s397, 1
        %s642 = smul.addr %s641, 16
        %s643 = scalar_lea.vmem [#allocation13], %s642
        %s644 = smul.u32 8, %s43
        %v646 = vld [vmem:[%s561] sm:$0xff]
        %v647 = vld [vmem:[%s571] sm:$0xff]
        %v648 = vld [vmem:[%s2] sm:$0x1]
        %v649 = vld [vmem:[#allocation7] sm:$0x1]
        %vm650 = vcmask 523264
        %v651 = vsel %vm650, %v646, 0.0
        %652 = vadd.xlane.f32.xlu0 %v651
        %v653 = vpop.xlane.xlu0 %652
        %v654 = vrcp.pop 64.0
        %v655 = vmul.f32 64.0, %v654
        %v656 = vsub.f32 1.0, %v655
        %v657 = vmul.f32 %v654, %v656
        %v658 = vadd.f32 %v654, %v657
        %vm659 = vweird.f32 %v654
        %v660 = vsel %vm659, %v654, %v658
        %v661 = vmul.f32 %v653, %v660
        %v662 = vsub.f32 %v646, %v661
        %v663 = vmul.f32 %v662, %v662
        %v664 = vsel %vm650, %v663, 0.0
        %665 = vadd.xlane.f32.xlu0 %v664
        %v666 = vpop.xlane.xlu0 %665
        %v667 = vmul.f32 %v666, %v660
        %v668 = vadd.f32 %v667, 1e-05
        %v669 = vrsqrt.pop %v668
        %v670 = vmul.f32 %v669, %v668
        %v671 = vmul.f32 %v670, %v669
        %v672 = vmul.f32 0.5, %v671
        %v673 = vsub.f32 1.5, %v672
        %v674 = vmul.f32 %v669, %v673
        %vm675 = vweird.f32 %v668
        %vm676 = vweird.f32 %v669
        %vm677 = vmor %vm675, %vm676
        %v678 = vsel %vm677, %v669, %v674
        %v679 = vmul.f32 %v662, %v678
        %v681 = vperm.slane %v648, 0
        %v683 = vmul.f32 %v679, %v681
        %v685 = vperm.slane %v649, 0
        %v687 = vadd.f32 %v683, %v685
        %v688 = vpack.c.bf16 %v687, %v687
        %v689 = vld [vmem:[#allocation8] sm:$0xf]
        %v690 = vld [vmem:[#allocation8 + $0x4] sm:$0xf]
        %v691 = vld [vmem:[#allocation8 + $0x8] sm:$0xf]
        %v692 = vld [vmem:[#allocation8 + $0xc] sm:$0xf]
        %v693 = vld [vmem:[#allocation8 + $0x10] sm:$0xf]
        %v694 = vld [vmem:[#allocation8 + $0x14] sm:$0xf]
        %v695 = vld [vmem:[#allocation8 + $0x18] sm:$0xf]
        %v696 = vld [vmem:[#allocation8 + $0x1c] sm:$0xf]
        %v705 = vunpack.c.l.b16 %v689
        %v706 = vunpack.c.l.b16 %v690
        %v707 = vunpack.c.l.b16 %v691
        %v708 = vunpack.c.l.b16 %v692
        %v709 = vunpack.c.l.b16 %v693
        %v710 = vunpack.c.l.b16 %v694
        %v711 = vunpack.c.l.b16 %v695
        %v712 = vunpack.c.l.b16 %v696
        %v713 = vpack.c.b16 %v706, %v705
        %v714 = vpack.c.b16 %v708, %v707
        %v715 = vpack.c.b16 %v710, %v709
        %v716 = vpack.c.b16 %v712, %v711
        %v722 = vsel %vm650, %v688, 0
        %724 = vmatpush.bf16.msra.mxu0 0
        %725 = vmatpush.bf16.msra.mxu0 0
        %726 = vmatpush.bf16.msra.mxu0 0
        %727 = vmatpush.bf16.msra.mxu0 0
        %728 = vmatpush.bf16.msra.mxu0 %v716
        %729 = vmatpush.bf16.msra.mxu0 %v715
        %730 = vmatpush.bf16.msra.mxu0 %v714
        %731 = vmatpush.bf16.msra.mxu0 %v713
        %732 = vmatmul.bf16.gmra.mxu0 %v722
        %v733 = vpop.f32.mrf.mxu0
        %v734 = vadd.f32 0.0, %v733
        %v735 = vpop.f32.mrf.mxu0
        %736 = vdwg.mxu0
        %v737 = vpack.c.bf16 %v647, %v647
        %v738 = vld [vmem:[#allocation10] sm:$0xf]
        %v739 = vld [vmem:[#allocation10 + $0x4] sm:$0xf]
        %v740 = vld [vmem:[#allocation10 + $0x8] sm:$0xf]
        %v741 = vld [vmem:[#allocation10 + $0xc] sm:$0xf]
        %v742 = vld [vmem:[#allocation10 + $0x10] sm:$0xf]
        %v743 = vld [vmem:[#allocation10 + $0x14] sm:$0xf]
        %v744 = vld [vmem:[#allocation10 + $0x18] sm:$0xf]
        %v745 = vld [vmem:[#allocation10 + $0x1c] sm:$0xf]
        %v746 = vld [vmem:[%s6] sm:$0x1]
        %v748 = vperm.slane %v746, 0
        %v758 = vunpack.c.l.b16 %v738
        %v759 = vunpack.c.l.b16 %v739
        %v760 = vunpack.c.l.b16 %v740
        %v761 = vunpack.c.l.b16 %v741
        %v762 = vunpack.c.l.b16 %v742
        %v763 = vunpack.c.l.b16 %v743
        %v764 = vunpack.c.l.b16 %v744
        %v765 = vunpack.c.l.b16 %v745
        %v766 = vpack.c.b16 %v759, %v758
        %v767 = vpack.c.b16 %v761, %v760
        %v768 = vpack.c.b16 %v763, %v762
        %v769 = vpack.c.b16 %v765, %v764
        %v775 = vsel %vm650, %v737, 0
        %777 = vmatpush.bf16.msra.mxu0 0
        %778 = vmatpush.bf16.msra.mxu0 0
        %779 = vmatpush.bf16.msra.mxu0 0
        %780 = vmatpush.bf16.msra.mxu0 0
        %781 = vmatpush.bf16.msra.mxu0 %v769
        %782 = vmatpush.bf16.msra.mxu0 %v768
        %783 = vmatpush.bf16.msra.mxu0 %v767
        %784 = vmatpush.bf16.msra.mxu0 %v766
        %785 = vmatmul.bf16.gmra.mxu0 %v775
        %v786 = vpop.f32.mrf.mxu0
        %v787 = vadd.f32 %v748, %v786
        %v788 = vpop.f32.mrf.mxu0
        %789 = vdwg.mxu0
        %v791 = vrot.slane %v734, 1
        %v792 = vrot.slane %v734, 2
        %v793 = vrot.slane %v734, 3
        %v794 = vrot.slane %v734, 4
        %v795 = vrot.slane %v734, 5
        %v796 = vrot.slane %v734, 6
        %v797 = vrot.slane %v734, 7
        %v798 = vperm.slane %v734, 0
        %v799 = vperm.slane %v791, 0
        %v800 = vperm.slane %v792, 0
        %v801 = vperm.slane %v793, 0
        %v802 = vperm.slane %v794, 0
        %v803 = vperm.slane %v795, 0
        %v804 = vperm.slane %v796, 0
        %v805 = vperm.slane %v797, 0
        %v814 = vadd.f32 %v798, %v787
        %v815 = vadd.f32 %v799, %v787
        %v816 = vadd.f32 %v800, %v787
        %v817 = vadd.f32 %v801, %v787
        %v818 = vadd.f32 %v802, %v787
        %v819 = vadd.f32 %v803, %v787
        %v820 = vadd.f32 %v804, %v787
        %v821 = vadd.f32 %v805, %v787
        %v822 = vmax.f32 %v814, 0.0
        %v823 = vmax.f32 %v815, 0.0
        %v824 = vmax.f32 %v816, 0.0
        %v825 = vmax.f32 %v817, 0.0
        %v826 = vmax.f32 %v818, 0.0
        %v827 = vmax.f32 %v819, 0.0
        %v828 = vmax.f32 %v820, 0.0
        %v829 = vmax.f32 %v821, 0.0
        %v830 = vld [vmem:[%s7] sm:$0x1]
        %v831 = vld [vmem:[%s8] sm:$0x1]
        %832 = vadd.xlane.f32.xlu0 %v822
        %v833 = vpop.xlane.xlu0 %832
        %834 = vadd.xlane.f32.xlu0 %v823
        %v835 = vpop.xlane.xlu0 %834
        %836 = vadd.xlane.f32.xlu0 %v824
        %v837 = vpop.xlane.xlu0 %836
        %838 = vadd.xlane.f32.xlu0 %v825
        %v839 = vpop.xlane.xlu0 %838
        %840 = vadd.xlane.f32.xlu0 %v826
        %v841 = vpop.xlane.xlu0 %840
        %842 = vadd.xlane.f32.xlu0 %v827
        %v843 = vpop.xlane.xlu0 %842
        %844 = vadd.xlane.f32.xlu0 %v828
        %v845 = vpop.xlane.xlu0 %844
        %846 = vadd.xlane.f32.xlu0 %v829
        %v847 = vpop.xlane.xlu0 %846
        %v848 = vrcp.pop 128.0
        %v849 = vmul.f32 128.0, %v848
        %v850 = vsub.f32 1.0, %v849
        %v851 = vmul.f32 %v848, %v850
        %v852 = vadd.f32 %v848, %v851
        %vm853 = vweird.f32 %v848
        %v854 = vsel %vm853, %v848, %v852
        %v855 = vmul.f32 %v833, %v854
        %v856 = vmul.f32 %v835, %v854
        %v857 = vmul.f32 %v837, %v854
        %v858 = vmul.f32 %v839, %v854
        %v859 = vmul.f32 %v841, %v854
        %v860 = vmul.f32 %v843, %v854
        %v861 = vmul.f32 %v845, %v854
        %v862 = vmul.f32 %v847, %v854
        %v863 = vsub.f32 %v822, %v855
        %v864 = vsub.f32 %v823, %v856
        %v865 = vsub.f32 %v824, %v857
        %v866 = vsub.f32 %v825, %v858
        %v867 = vsub.f32 %v826, %v859
        %v868 = vsub.f32 %v827, %v860
        %v869 = vsub.f32 %v828, %v861
        %v870 = vsub.f32 %v829, %v862
        %v871 = vmul.f32 %v863, %v863
        %v872 = vmul.f32 %v864, %v864
        %v873 = vmul.f32 %v865, %v865
        %v874 = vmul.f32 %v866, %v866
        %v875 = vmul.f32 %v867, %v867
        %v876 = vmul.f32 %v868, %v868
        %v877 = vmul.f32 %v869, %v869
        %v878 = vmul.f32 %v870, %v870
        %879 = vadd.xlane.f32.xlu0 %v871
        %v880 = vpop.xlane.xlu0 %879
        %881 = vadd.xlane.f32.xlu0 %v872
        %v882 = vpop.xlane.xlu0 %881
        %883 = vadd.xlane.f32.xlu0 %v873
        %v884 = vpop.xlane.xlu0 %883
        %885 = vadd.xlane.f32.xlu0 %v874
        %v886 = vpop.xlane.xlu0 %885
        %887 = vadd.xlane.f32.xlu0 %v875
        %v888 = vpop.xlane.xlu0 %887
        %889 = vadd.xlane.f32.xlu0 %v876
        %v890 = vpop.xlane.xlu0 %889
        %891 = vadd.xlane.f32.xlu0 %v877
        %v892 = vpop.xlane.xlu0 %891
        %893 = vadd.xlane.f32.xlu0 %v878
        %v894 = vpop.xlane.xlu0 %893
        %v895 = vmul.f32 %v880, %v854
        %v896 = vmul.f32 %v882, %v854
        %v897 = vmul.f32 %v884, %v854
        %v898 = vmul.f32 %v886, %v854
        %v899 = vmul.f32 %v888, %v854
        %v900 = vmul.f32 %v890, %v854
        %v901 = vmul.f32 %v892, %v854
        %v902 = vmul.f32 %v894, %v854
        %v903 = vadd.f32 %v895, 1e-05
        %v904 = vadd.f32 %v896, 1e-05
        %v905 = vadd.f32 %v897, 1e-05
        %v906 = vadd.f32 %v898, 1e-05
        %v907 = vadd.f32 %v899, 1e-05
        %v908 = vadd.f32 %v900, 1e-05
        %v909 = vadd.f32 %v901, 1e-05
        %v910 = vadd.f32 %v902, 1e-05
        %v911 = vrsqrt.pop %v903
        %v912 = vmul.f32 %v911, %v903
        %v913 = vmul.f32 %v912, %v911
        %v914 = vmul.f32 0.5, %v913
        %v915 = vsub.f32 1.5, %v914
        %v916 = vmul.f32 %v911, %v915
        %vm917 = vweird.f32 %v903
        %vm918 = vweird.f32 %v911
        %vm919 = vmor %vm917, %vm918
        %v920 = vsel %vm919, %v911, %v916
        %v921 = vrsqrt.pop %v904
        %v922 = vmul.f32 %v921, %v904
        %v923 = vmul.f32 %v922, %v921
        %v924 = vmul.f32 0.5, %v923
        %v925 = vsub.f32 1.5, %v924
        %v926 = vmul.f32 %v921, %v925
        %vm927 = vweird.f32 %v904
        %vm928 = vweird.f32 %v921
        %vm929 = vmor %vm927, %vm928
        %v930 = vsel %vm929, %v921, %v926
        %v931 = vrsqrt.pop %v905
        %v932 = vmul.f32 %v931, %v905
        %v933 = vmul.f32 %v932, %v931
        %v934 = vmul.f32 0.5, %v933
        %v935 = vsub.f32 1.5, %v934
        %v936 = vmul.f32 %v931, %v935
        %vm937 = vweird.f32 %v905
        %vm938 = vweird.f32 %v931
        %vm939 = vmor %vm937, %vm938
        %v940 = vsel %vm939, %v931, %v936
        %v941 = vrsqrt.pop %v906
        %v942 = vmul.f32 %v941, %v906
        %v943 = vmul.f32 %v942, %v941
        %v944 = vmul.f32 0.5, %v943
        %v945 = vsub.f32 1.5, %v944
        %v946 = vmul.f32 %v941, %v945
        %vm947 = vweird.f32 %v906
        %vm948 = vweird.f32 %v941
        %vm949 = vmor %vm947, %vm948
        %v950 = vsel %vm949, %v941, %v946
        %v951 = vrsqrt.pop %v907
        %v952 = vmul.f32 %v951, %v907
        %v953 = vmul.f32 %v952, %v951
        %v954 = vmul.f32 0.5, %v953
        %v955 = vsub.f32 1.5, %v954
        %v956 = vmul.f32 %v951, %v955
        %vm957 = vweird.f32 %v907
        %vm958 = vweird.f32 %v951
        %vm959 = vmor %vm957, %vm958
        %v960 = vsel %vm959, %v951, %v956
        %v961 = vrsqrt.pop %v908
        %v962 = vmul.f32 %v961, %v908
        %v963 = vmul.f32 %v962, %v961
        %v964 = vmul.f32 0.5, %v963
        %v965 = vsub.f32 1.5, %v964
        %v966 = vmul.f32 %v961, %v965
        %vm967 = vweird.f32 %v908
        %vm968 = vweird.f32 %v961
        %vm969 = vmor %vm967, %vm968
        %v970 = vsel %vm969, %v961, %v966
        %v971 = vrsqrt.pop %v909
        %v972 = vmul.f32 %v971, %v909
        %v973 = vmul.f32 %v972, %v971
        %v974 = vmul.f32 0.5, %v973
        %v975 = vsub.f32 1.5, %v974
        %v976 = vmul.f32 %v971, %v975
        %vm977 = vweird.f32 %v909
        %vm978 = vweird.f32 %v971
        %vm979 = vmor %vm977, %vm978
        %v980 = vsel %vm979, %v971, %v976
        %v981 = vrsqrt.pop %v910
        %v982 = vmul.f32 %v981, %v910
        %v983 = vmul.f32 %v982, %v981
        %v984 = vmul.f32 0.5, %v983
        %v985 = vsub.f32 1.5, %v984
        %v986 = vmul.f32 %v981, %v985
        %vm987 = vweird.f32 %v910
        %vm988 = vweird.f32 %v981
        %vm989 = vmor %vm987, %vm988
        %v990 = vsel %vm989, %v981, %v986
        %v991 = vmul.f32 %v863, %v920
        %v992 = vmul.f32 %v864, %v930
        %v993 = vmul.f32 %v865, %v940
        %v994 = vmul.f32 %v866, %v950
        %v995 = vmul.f32 %v867, %v960
        %v996 = vmul.f32 %v868, %v970
        %v997 = vmul.f32 %v869, %v980
        %v998 = vmul.f32 %v870, %v990
        %v1000 = vperm.slane %v830, 0
        %v1002 = vmul.f32 %v991, %v1000
        %v1003 = vmul.f32 %v992, %v1000
        %v1004 = vmul.f32 %v993, %v1000
        %v1005 = vmul.f32 %v994, %v1000
        %v1006 = vmul.f32 %v995, %v1000
        %v1007 = vmul.f32 %v996, %v1000
        %v1008 = vmul.f32 %v997, %v1000
        %v1009 = vmul.f32 %v998, %v1000
        %v1011 = vperm.slane %v831, 0
        %v1013 = vadd.f32 %v1002, %v1011
        %v1014 = vadd.f32 %v1003, %v1011
        %v1015 = vadd.f32 %v1004, %v1011
        %v1016 = vadd.f32 %v1005, %v1011
        %v1017 = vadd.f32 %v1006, %v1011
        %v1018 = vadd.f32 %v1007, %v1011
        %v1019 = vadd.f32 %v1008, %v1011
        %v1020 = vadd.f32 %v1009, %v1011
        %v1021 = vpack.c.bf16 %v1014, %v1013
        %v1022 = vpack.c.bf16 %v1016, %v1015
        %v1023 = vpack.c.bf16 %v1018, %v1017
        %v1024 = vpack.c.bf16 %v1020, %v1019
        %v1025 = vld [vmem:[#allocation11] sm:$0xf]
        %v1026 = vld [vmem:[#allocation11 + $0x4] sm:$0xf]
        %v1027 = vld [vmem:[#allocation11 + $0x8] sm:$0xf]
        %v1028 = vld [vmem:[#allocation11 + $0xc] sm:$0xf]
        %v1029 = vld [vmem:[#allocation11 + $0x10] sm:$0xf]
        %v1030 = vld [vmem:[#allocation11 + $0x14] sm:$0xf]
        %v1031 = vld [vmem:[#allocation11 + $0x18] sm:$0xf]
        %v1032 = vld [vmem:[#allocation11 + $0x1c] sm:$0xf]
        %v1033 = vld [vmem:[#allocation11 + $0x20] sm:$0xf]
        %v1034 = vld [vmem:[#allocation11 + $0x24] sm:$0xf]
        %v1035 = vld [vmem:[#allocation11 + $0x28] sm:$0xf]
        %v1036 = vld [vmem:[#allocation11 + $0x2c] sm:$0xf]
        %v1037 = vld [vmem:[#allocation11 + $0x30] sm:$0xf]
        %v1038 = vld [vmem:[#allocation11 + $0x34] sm:$0xf]
        %v1039 = vld [vmem:[#allocation11 + $0x38] sm:$0xf]
        %v1040 = vld [vmem:[#allocation11 + $0x3c] sm:$0xf]
        %v1041 = vld [vmem:[%s10] sm:$0x1]
        %v1043 = vperm.slane %v1041, 0
        %v1061 = vunpack.c.l.b16 %v1025
        %v1062 = vunpack.c.l.b16 %v1026
        %v1063 = vunpack.c.l.b16 %v1027
        %v1064 = vunpack.c.l.b16 %v1028
        %v1065 = vunpack.c.l.b16 %v1029
        %v1066 = vunpack.c.l.b16 %v1030
        %v1067 = vunpack.c.l.b16 %v1031
        %v1068 = vunpack.c.l.b16 %v1032
        %v1069 = vunpack.c.l.b16 %v1033
        %v1070 = vunpack.c.l.b16 %v1034
        %v1071 = vunpack.c.l.b16 %v1035
        %v1072 = vunpack.c.l.b16 %v1036
        %v1073 = vunpack.c.l.b16 %v1037
        %v1074 = vunpack.c.l.b16 %v1038
        %v1075 = vunpack.c.l.b16 %v1039
        %v1076 = vunpack.c.l.b16 %v1040
        %v1077 = vpack.c.b16 %v1062, %v1061
        %v1078 = vpack.c.b16 %v1064, %v1063
        %v1079 = vpack.c.b16 %v1066, %v1065
        %v1080 = vpack.c.b16 %v1068, %v1067
        %v1081 = vpack.c.b16 %v1070, %v1069
        %v1082 = vpack.c.b16 %v1072, %v1071
        %v1083 = vpack.c.b16 %v1074, %v1073
        %v1084 = vpack.c.b16 %v1076, %v1075
        %1093 = vmatpush.bf16.msra.mxu0 %v1084
        %1094 = vmatpush.bf16.msra.mxu0 %v1083
        %1095 = vmatpush.bf16.msra.mxu0 %v1082
        %1096 = vmatpush.bf16.msra.mxu0 %v1081
        %1097 = vmatpush.bf16.msra.mxu0 %v1080
        %1098 = vmatpush.bf16.msra.mxu0 %v1079
        %1099 = vmatpush.bf16.msra.mxu0 %v1078
        %1100 = vmatpush.bf16.msra.mxu0 %v1077
        %1101 = vmatmul.bf16.gmra.mxu0 %v1021
        %v1102 = vpop.f32.mrf.mxu0
        %v1103 = vadd.f32 %v1043, %v1102
        %v1104 = vpop.f32.mrf.mxu0
        %v1105 = vadd.f32 %v1043, %v1104
        %1106 = vmatmul.bf16.gmra.mxu0 %v1022
        %v1107 = vpop.f32.mrf.mxu0
        %v1108 = vadd.f32 %v1043, %v1107
        %v1109 = vpop.f32.mrf.mxu0
        %v1110 = vadd.f32 %v1043, %v1109
        %1111 = vmatmul.bf16.gmra.mxu0 %v1023
        %v1112 = vpop.f32.mrf.mxu0
        %v1113 = vadd.f32 %v1043, %v1112
        %v1114 = vpop.f32.mrf.mxu0
        %v1115 = vadd.f32 %v1043, %v1114
        %1116 = vmatmul.bf16.gmra.mxu0 %v1024
        %v1117 = vpop.f32.mrf.mxu0
        %v1118 = vadd.f32 %v1043, %v1117
        %v1119 = vpop.f32.mrf.mxu0
        %v1120 = vadd.f32 %v1043, %v1119
        %1121 = vdwg.mxu0
        %v1122 = vmax.f32 %v1103, 0.0
        %v1123 = vmax.f32 %v1105, 0.0
        %v1124 = vmax.f32 %v1108, 0.0
        %v1125 = vmax.f32 %v1110, 0.0
        %v1126 = vmax.f32 %v1113, 0.0
        %v1127 = vmax.f32 %v1115, 0.0
        %v1128 = vmax.f32 %v1118, 0.0
        %v1129 = vmax.f32 %v1120, 0.0
        %v1130 = vld [vmem:[%s11] sm:$0x1]
        %v1131 = vld [vmem:[%s12] sm:$0x1]
        %1132 = vadd.xlane.f32.xlu0 %v1122
        %v1133 = vpop.xlane.xlu0 %1132
        %1134 = vadd.xlane.f32.xlu0 %v1123
        %v1135 = vpop.xlane.xlu0 %1134
        %1136 = vadd.xlane.f32.xlu0 %v1124
        %v1137 = vpop.xlane.xlu0 %1136
        %1138 = vadd.xlane.f32.xlu0 %v1125
        %v1139 = vpop.xlane.xlu0 %1138
        %1140 = vadd.xlane.f32.xlu0 %v1126
        %v1141 = vpop.xlane.xlu0 %1140
        %1142 = vadd.xlane.f32.xlu0 %v1127
        %v1143 = vpop.xlane.xlu0 %1142
        %1144 = vadd.xlane.f32.xlu0 %v1128
        %v1145 = vpop.xlane.xlu0 %1144
        %1146 = vadd.xlane.f32.xlu0 %v1129
        %v1147 = vpop.xlane.xlu0 %1146
        %v1148 = vmul.f32 %v1133, %v854
        %v1149 = vmul.f32 %v1135, %v854
        %v1150 = vmul.f32 %v1137, %v854
        %v1151 = vmul.f32 %v1139, %v854
        %v1152 = vmul.f32 %v1141, %v854
        %v1153 = vmul.f32 %v1143, %v854
        %v1154 = vmul.f32 %v1145, %v854
        %v1155 = vmul.f32 %v1147, %v854
        %v1156 = vsub.f32 %v1122, %v1148
        %v1157 = vsub.f32 %v1123, %v1149
        %v1158 = vsub.f32 %v1124, %v1150
        %v1159 = vsub.f32 %v1125, %v1151
        %v1160 = vsub.f32 %v1126, %v1152
        %v1161 = vsub.f32 %v1127, %v1153
        %v1162 = vsub.f32 %v1128, %v1154
        %v1163 = vsub.f32 %v1129, %v1155
        %v1164 = vmul.f32 %v1156, %v1156
        %v1165 = vmul.f32 %v1157, %v1157
        %v1166 = vmul.f32 %v1158, %v1158
        %v1167 = vmul.f32 %v1159, %v1159
        %v1168 = vmul.f32 %v1160, %v1160
        %v1169 = vmul.f32 %v1161, %v1161
        %v1170 = vmul.f32 %v1162, %v1162
        %v1171 = vmul.f32 %v1163, %v1163
        %1172 = vadd.xlane.f32.xlu0 %v1164
        %v1173 = vpop.xlane.xlu0 %1172
        %1174 = vadd.xlane.f32.xlu0 %v1165
        %v1175 = vpop.xlane.xlu0 %1174
        %1176 = vadd.xlane.f32.xlu0 %v1166
        %v1177 = vpop.xlane.xlu0 %1176
        %1178 = vadd.xlane.f32.xlu0 %v1167
        %v1179 = vpop.xlane.xlu0 %1178
        %1180 = vadd.xlane.f32.xlu0 %v1168
        %v1181 = vpop.xlane.xlu0 %1180
        %1182 = vadd.xlane.f32.xlu0 %v1169
        %v1183 = vpop.xlane.xlu0 %1182
        %1184 = vadd.xlane.f32.xlu0 %v1170
        %v1185 = vpop.xlane.xlu0 %1184
        %1186 = vadd.xlane.f32.xlu0 %v1171
        %v1187 = vpop.xlane.xlu0 %1186
        %v1188 = vmul.f32 %v1173, %v854
        %v1189 = vmul.f32 %v1175, %v854
        %v1190 = vmul.f32 %v1177, %v854
        %v1191 = vmul.f32 %v1179, %v854
        %v1192 = vmul.f32 %v1181, %v854
        %v1193 = vmul.f32 %v1183, %v854
        %v1194 = vmul.f32 %v1185, %v854
        %v1195 = vmul.f32 %v1187, %v854
        %v1196 = vadd.f32 %v1188, 1e-05
        %v1197 = vadd.f32 %v1189, 1e-05
        %v1198 = vadd.f32 %v1190, 1e-05
        %v1199 = vadd.f32 %v1191, 1e-05
        %v1200 = vadd.f32 %v1192, 1e-05
        %v1201 = vadd.f32 %v1193, 1e-05
        %v1202 = vadd.f32 %v1194, 1e-05
        %v1203 = vadd.f32 %v1195, 1e-05
        %v1204 = vrsqrt.pop %v1196
        %v1205 = vmul.f32 %v1204, %v1196
        %v1206 = vmul.f32 %v1205, %v1204
        %v1207 = vmul.f32 0.5, %v1206
        %v1208 = vsub.f32 1.5, %v1207
        %v1209 = vmul.f32 %v1204, %v1208
        %vm1210 = vweird.f32 %v1196
        %vm1211 = vweird.f32 %v1204
        %vm1212 = vmor %vm1210, %vm1211
        %v1213 = vsel %vm1212, %v1204, %v1209
        %v1214 = vrsqrt.pop %v1197
        %v1215 = vmul.f32 %v1214, %v1197
        %v1216 = vmul.f32 %v1215, %v1214
        %v1217 = vmul.f32 0.5, %v1216
        %v1218 = vsub.f32 1.5, %v1217
        %v1219 = vmul.f32 %v1214, %v1218
        %vm1220 = vweird.f32 %v1197
        %vm1221 = vweird.f32 %v1214
        %vm1222 = vmor %vm1220, %vm1221
        %v1223 = vsel %vm1222, %v1214, %v1219
        %v1224 = vrsqrt.pop %v1198
        %v1225 = vmul.f32 %v1224, %v1198
        %v1226 = vmul.f32 %v1225, %v1224
        %v1227 = vmul.f32 0.5, %v1226
        %v1228 = vsub.f32 1.5, %v1227
        %v1229 = vmul.f32 %v1224, %v1228
        %vm1230 = vweird.f32 %v1198
        %vm1231 = vweird.f32 %v1224
        %vm1232 = vmor %vm1230, %vm1231
        %v1233 = vsel %vm1232, %v1224, %v1229
        %v1234 = vrsqrt.pop %v1199
        %v1235 = vmul.f32 %v1234, %v1199
        %v1236 = vmul.f32 %v1235, %v1234
        %v1237 = vmul.f32 0.5, %v1236
        %v1238 = vsub.f32 1.5, %v1237
        %v1239 = vmul.f32 %v1234, %v1238
        %vm1240 = vweird.f32 %v1199
        %vm1241 = vweird.f32 %v1234
        %vm1242 = vmor %vm1240, %vm1241
        %v1243 = vsel %vm1242, %v1234, %v1239
        %v1244 = vrsqrt.pop %v1200
        %v1245 = vmul.f32 %v1244, %v1200
        %v1246 = vmul.f32 %v1245, %v1244
        %v1247 = vmul.f32 0.5, %v1246
        %v1248 = vsub.f32 1.5, %v1247
        %v1249 = vmul.f32 %v1244, %v1248
        %vm1250 = vweird.f32 %v1200
        %vm1251 = vweird.f32 %v1244
        %vm1252 = vmor %vm1250, %vm1251
        %v1253 = vsel %vm1252, %v1244, %v1249
        %v1254 = vrsqrt.pop %v1201
        %v1255 = vmul.f32 %v1254, %v1201
        %v1256 = vmul.f32 %v1255, %v1254
        %v1257 = vmul.f32 0.5, %v1256
        %v1258 = vsub.f32 1.5, %v1257
        %v1259 = vmul.f32 %v1254, %v1258
        %vm1260 = vweird.f32 %v1201
        %vm1261 = vweird.f32 %v1254
        %vm1262 = vmor %vm1260, %vm1261
        %v1263 = vsel %vm1262, %v1254, %v1259
        %v1264 = vrsqrt.pop %v1202
        %v1265 = vmul.f32 %v1264, %v1202
        %v1266 = vmul.f32 %v1265, %v1264
        %v1267 = vmul.f32 0.5, %v1266
        %v1268 = vsub.f32 1.5, %v1267
        %v1269 = vmul.f32 %v1264, %v1268
        %vm1270 = vweird.f32 %v1202
        %vm1271 = vweird.f32 %v1264
        %vm1272 = vmor %vm1270, %vm1271
        %v1273 = vsel %vm1272, %v1264, %v1269
        %v1274 = vrsqrt.pop %v1203
        %v1275 = vmul.f32 %v1274, %v1203
        %v1276 = vmul.f32 %v1275, %v1274
        %v1277 = vmul.f32 0.5, %v1276
        %v1278 = vsub.f32 1.5, %v1277
        %v1279 = vmul.f32 %v1274, %v1278
        %vm1280 = vweird.f32 %v1203
        %vm1281 = vweird.f32 %v1274
        %vm1282 = vmor %vm1280, %vm1281
        %v1283 = vsel %vm1282, %v1274, %v1279
        %v1284 = vmul.f32 %v1156, %v1213
        %v1285 = vmul.f32 %v1157, %v1223
        %v1286 = vmul.f32 %v1158, %v1233
        %v1287 = vmul.f32 %v1159, %v1243
        %v1288 = vmul.f32 %v1160, %v1253
        %v1289 = vmul.f32 %v1161, %v1263
        %v1290 = vmul.f32 %v1162, %v1273
        %v1291 = vmul.f32 %v1163, %v1283
        %v1293 = vperm.slane %v1130, 0
        %v1295 = vmul.f32 %v1284, %v1293
        %v1296 = vmul.f32 %v1285, %v1293
        %v1297 = vmul.f32 %v1286, %v1293
        %v1298 = vmul.f32 %v1287, %v1293
        %v1299 = vmul.f32 %v1288, %v1293
        %v1300 = vmul.f32 %v1289, %v1293
        %v1301 = vmul.f32 %v1290, %v1293
        %v1302 = vmul.f32 %v1291, %v1293
        %v1304 = vperm.slane %v1131, 0
        %v1306 = vadd.f32 %v1295, %v1304
        %v1307 = vadd.f32 %v1296, %v1304
        %v1308 = vadd.f32 %v1297, %v1304
        %v1309 = vadd.f32 %v1298, %v1304
        %v1310 = vadd.f32 %v1299, %v1304
        %v1311 = vadd.f32 %v1300, %v1304
        %v1312 = vadd.f32 %v1301, %v1304
        %v1313 = vadd.f32 %v1302, %v1304
        %v1314 = vld [vmem:[%s13] sm:$0x3]
        %v1315 = vld [vmem:[%s14] sm:$0x1]
        %v1316 = vperm.slane %v1314, 0
        %v1317 = vmul.f32 %v1306, %v1316
        %v1318 = vmul.f32 %v1307, %v1316
        %v1319 = vmul.f32 %v1308, %v1316
        %v1320 = vmul.f32 %v1309, %v1316
        %v1321 = vmul.f32 %v1310, %v1316
        %v1322 = vmul.f32 %v1311, %v1316
        %v1323 = vmul.f32 %v1312, %v1316
        %v1324 = vmul.f32 %v1313, %v1316
        %1325 = vadd.xlane.f32.xlu0 %v1317
        %v1326 = vpop.xlane.xlu0 %1325
        %1327 = vadd.xlane.f32.xlu0 %v1318
        %v1328 = vpop.xlane.xlu0 %1327
        %1329 = vadd.xlane.f32.xlu0 %v1319
        %v1330 = vpop.xlane.xlu0 %1329
        %1331 = vadd.xlane.f32.xlu0 %v1320
        %v1332 = vpop.xlane.xlu0 %1331
        %1333 = vadd.xlane.f32.xlu0 %v1321
        %v1334 = vpop.xlane.xlu0 %1333
        %1335 = vadd.xlane.f32.xlu0 %v1322
        %v1336 = vpop.xlane.xlu0 %1335
        %1337 = vadd.xlane.f32.xlu0 %v1323
        %v1338 = vpop.xlane.xlu0 %1337
        %1339 = vadd.xlane.f32.xlu0 %v1324
        %v1340 = vpop.xlane.xlu0 %1339
        %v1342 = vperm.slane %v1315, 0
        %1343 = vset.pattern.permute.xlu0 0
        %1344 = vperm.xlu0 %1343, %v1342
        %v1345 = vpop.permute.xlu0 %1344
        %v1347 = vadd.f32 %v1326, %v1345
        %v1348 = vadd.f32 %v1328, %v1345
        %v1349 = vadd.f32 %v1330, %v1345
        %v1350 = vadd.f32 %v1332, %v1345
        %v1351 = vadd.f32 %v1334, %v1345
        %v1352 = vadd.f32 %v1336, %v1345
        %v1353 = vadd.f32 %v1338, %v1345
        %v1354 = vadd.f32 %v1340, %v1345
        %v1363 = vlaneseq
        %v1364 = vand.u32 %v1363, 127
        %v1365 = vperm.slane %v1347, %v1364
        %v1366 = vperm.slane %v1348, %v1364
        %v1367 = vperm.slane %v1349, %v1364
        %v1368 = vperm.slane %v1350, %v1364
        %v1369 = vperm.slane %v1351, %v1364
        %v1370 = vperm.slane %v1352, %v1364
        %v1371 = vperm.slane %v1353, %v1364
        %v1372 = vperm.slane %v1354, %v1364
        %vm1381 = vcmask 57344
        %1382 = vst.msk [vmem:[%s643] sm:$0x1] %vm1381, %v1365
        %1383 = vst.msk [vmem:[%s643 + $0x2] sm:$0x1] %vm1381, %v1366
        %1384 = vst.msk [vmem:[%s643 + $0x4] sm:$0x1] %vm1381, %v1367
        %1385 = vst.msk [vmem:[%s643 + $0x6] sm:$0x1] %vm1381, %v1368
        %1386 = vst.msk [vmem:[%s643 + $0x8] sm:$0x1] %vm1381, %v1369
        %1387 = vst.msk [vmem:[%s643 + $0xa] sm:$0x1] %vm1381, %v1370
        %1388 = vst.msk [vmem:[%s643 + $0xc] sm:$0x1] %vm1381, %v1371
        %1389 = vst.msk [vmem:[%s643 + $0xe] sm:$0x1] %vm1381, %v1372
        %v1390 = vperm.slane %v1314, 1
        %v1391 = vmul.f32 %v1306, %v1390
        %v1392 = vmul.f32 %v1307, %v1390
        %v1393 = vmul.f32 %v1308, %v1390
        %v1394 = vmul.f32 %v1309, %v1390
        %v1395 = vmul.f32 %v1310, %v1390
        %v1396 = vmul.f32 %v1311, %v1390
        %v1397 = vmul.f32 %v1312, %v1390
        %v1398 = vmul.f32 %v1313, %v1390
        %1399 = vadd.xlane.f32.xlu0 %v1391
        %v1400 = vpop.xlane.xlu0 %1399
        %1401 = vadd.xlane.f32.xlu0 %v1392
        %v1402 = vpop.xlane.xlu0 %1401
        %1403 = vadd.xlane.f32.xlu0 %v1393
        %v1404 = vpop.xlane.xlu0 %1403
        %1405 = vadd.xlane.f32.xlu0 %v1394
        %v1406 = vpop.xlane.xlu0 %1405
        %1407 = vadd.xlane.f32.xlu0 %v1395
        %v1408 = vpop.xlane.xlu0 %1407
        %1409 = vadd.xlane.f32.xlu0 %v1396
        %v1410 = vpop.xlane.xlu0 %1409
        %1411 = vadd.xlane.f32.xlu0 %v1397
        %v1412 = vpop.xlane.xlu0 %1411
        %1413 = vadd.xlane.f32.xlu0 %v1398
        %v1414 = vpop.xlane.xlu0 %1413
        %1415 = vset.pattern.permute.xlu0 1
        %1416 = vperm.xlu0 %1415, %v1342
        %v1417 = vpop.permute.xlu0 %1416
        %v1419 = vadd.f32 %v1400, %v1417
        %v1420 = vadd.f32 %v1402, %v1417
        %v1421 = vadd.f32 %v1404, %v1417
        %v1422 = vadd.f32 %v1406, %v1417
        %v1423 = vadd.f32 %v1408, %v1417
        %v1424 = vadd.f32 %v1410, %v1417
        %v1425 = vadd.f32 %v1412, %v1417
        %v1426 = vadd.f32 %v1414, %v1417
        %v1435 = vperm.slane %v1419, %v1364
        %v1436 = vperm.slane %v1420, %v1364
        %v1437 = vperm.slane %v1421, %v1364
        %v1438 = vperm.slane %v1422, %v1364
        %v1439 = vperm.slane %v1423, %v1364
        %v1440 = vperm.slane %v1424, %v1364
        %v1441 = vperm.slane %v1425, %v1364
        %v1442 = vperm.slane %v1426, %v1364
        %1451 = vst.msk [vmem:[%s643 + $0x1] sm:$0x1] %vm1381, %v1435
        %1452 = vst.msk [vmem:[%s643 + $0x3] sm:$0x1] %vm1381, %v1436
        %1453 = vst.msk [vmem:[%s643 + $0x5] sm:$0x1] %vm1381, %v1437
        %1454 = vst.msk [vmem:[%s643 + $0x7] sm:$0x1] %vm1381, %v1438
        %1455 = vst.msk [vmem:[%s643 + $0x9] sm:$0x1] %vm1381, %v1439
        %1456 = vst.msk [vmem:[%s643 + $0xb] sm:$0x1] %vm1381, %v1440
        %1457 = vst.msk [vmem:[%s643 + $0xd] sm:$0x1] %vm1381, %v1441
        %1458 = vst.msk [vmem:[%s643 + $0xf] sm:$0x1] %vm1381, %v1442
        %s1459 = sand.u32 %s397, 1
        %s1460 = scalar_lea.sflag [#allocation4], %s1459
        %s1461 = sand.u32 %s397, 1
        %s1462 = smul.addr %s1461, 16
        %s1463 = scalar_lea.vmem [#allocation13], %s1462
        // Predicated region
        $region105: #{tpu_custom_call.1} parent=79 // pred_check
          %p1464 = pneg %p407
        $region106: #{tpu_custom_call.1} parent=79 // pred_check_branch
          %1466 = sbr.rel (%p1464) target = $region108
        $region107: #{tpu_custom_call.1} parent=79 // pred_region
          %s1467 = smul.u32 8, %s43
          %1469 = vsyncadd %s1460, 0
          %s1470 = sadd.s32 %s44, %s1467
          %s1471 = smul.addr %s42, 8
          %s1472 = sadd.s32 %s1470, %s1471
          %s1473 = smul.addr %s1472, 2
          %s1474 = scalar_lea.hbm %s15, %s1473
          %s1475 = sshll.u32 %s1463, 4
          %s1476 = int_to_ptr.vmem [resolvable:$true] %s1475
          %s1477 = sshll.u32 %s1474, 4
          %s1478 = int_to_ptr.hbm [resolvable:$true] %s1477
          %1483 = dma.vmem_to_hbm [thread:$0]  %s1476, 256, %s1478, %s1460, 32, 32, 2
        $region108: #{tpu_custom_call.1} parent=79 // pred_fallthru
          _
      $region80: #{tpu_custom_call.1} parent=5 // pred_fallthru
        _
      %p1484 = scmp.le.s32.totalorder 2, %s32
      // Predicated region
      $region109: #{tpu_custom_call.1} parent=5 // pred_check
        %p1485 = pneg %p1484
      $region110: #{tpu_custom_call.1} parent=5 // pred_check_branch
        %1487 = sbr.rel (%p1485) target = $region112
      $region111: #{tpu_custom_call.1} parent=5 // pred_region
        %s1488 = ssub.s32 %s32, 2
        // Predicated region
        $region113: #{tpu_custom_call.1} parent=111 // pred_check
          %p1489 = pneg %p413
        $region114: #{tpu_custom_call.1} parent=111 // pred_check_branch
          %1491 = sbr.rel (%p1489) target = $region116
        $region115: #{tpu_custom_call.1} parent=111 // pred_region
          %s1492 = sand.u32 %s398, 1
          %s1493 = scalar_lea.sflag [#allocation4], %s1492
          %s1494 = sand.u32 %s398, 1
          %s1495 = smul.addr %s1494, 16
          %s1496 = scalar_lea.vmem [#allocation13], %s1495
          %1498 = dma.done %s1493, 256
        $region116: #{tpu_custom_call.1} parent=111 // pred_fallthru
          _
      $region112: #{tpu_custom_call.1} parent=5 // pred_fallthru
        _
    $region6: #{tpu_custom_call.1} parent=1 // loop_footer
      %s36 = sadd.s32 1, %s32
    $region7: #{tpu_custom_call.1} parent=1 // loop_footer_branch
      %31 = sbr.rel target = $region3
    $region8: #{tpu_custom_call.1} parent=1 // loop_exit
      _
    %1499 = vsyncpa [#allocation3], 1
    %s1500 = scalar_lea.sflag [#allocation3], 1
    %1501 = vsyncpa %s1500, 1
    %1502 = vsyncpa [#allocation6], 1
    %s1503 = scalar_lea.sflag [#allocation6], 1
    %1504 = vsyncpa %s1503, 1
    %1505 = vsyncpa [#allocation9], 1
    %1506 = vsyncpa [#allocation12], 1
    %1507 = vsyncpa [#allocation4], 1
    %s1508 = scalar_lea.sflag [#allocation4], 1
    %1509 = vsyncpa %s1508, 1

</llo_original>
